<compile_context>
chip_gen: v7x
topology: tpu7x:2x2x1
jax: 0.10.0
libtpu: 0.0.40
codegen_flags: <defaults>
</compile_context>

<pallas_src>
import functools
import math

import numpy as np
import jax
import jax.numpy as jnp
from jax import lax
from jax.experimental import pallas as pl
from jax.experimental.pallas import tpu as pltpu


_MXU_DTYPE = jnp.bfloat16      # MXU-native operand dtype; accumulation stays f32.


def _vmem_capacity_bytes():
    try:
        return int(pltpu.get_tpu_info().vmem_capacity_bytes)
    except Exception:
        return 64 * 1024 * 1024    # conservative fallback (v7x per-core VMEM)


_VMEM_CAP = _vmem_capacity_bytes()
_VMEM_LIMIT = int(_VMEM_CAP * 3 // 4)          # 96 MiB on v5e/v6e, 48 MiB on v7x
_VMEM_BLOCK_BUDGET = int(_VMEM_CAP * 5 // 8)   # block-sizing budget w/ headroom


def _channel_block_candidates(c):
    cands = {c}
    for t in (1024, 512, 384, 256, 128, 64, 32, 16, 8):
        if t < c and c % t == 0:
            cands.add(t)
    return sorted(cands, reverse=True)


def _pick_channel_block(c, est_fn):
    """Largest channel block (divisor of c, lane-dense when possible) whose
    estimated per-step VMEM working set fits the budget."""
    cands = _channel_block_candidates(c)
    for t in cands:
        if est_fn(t) <= _VMEM_BLOCK_BUDGET:
            return t
    return cands[-1]


# --------------------------------------------------------------------------
# Blur (upfirdn2d with up = down = 1), NHWC, channels on the lane axis.
# Optional per-(sample, channel) scale fused into the output tile (used by the
# downsample path to fold the style modulation into the blur for free).
# --------------------------------------------------------------------------

def _blur_body(scale_ref, x_ref, o_ref, xpad_ref, row_ref, *, taps, separable,
               p0, p1, H, W, Hp, Wp, Ho, Wo, kh, kw):
    # scale_ref: (1, 1, tc)   x_ref: (1, H, W, tc)   o_ref: (1, Ho, Wo, tc)
    # xpad_ref: (Hp, Wp, tc) x-dtype scratch   row_ref: (Hp, Wo, tc) f32 scratch
    tc = x_ref.shape[-1]
    zdt = xpad_ref.dtype
    # Zero only the halo strips; the interior is fully overwritten below.
    if p0 > 0:
        xpad_ref[0:p0, :, :] = jnp.zeros((p0, Wp, tc), zdt)
        xpad_ref[p0:p0 + H, 0:p0, :] = jnp.zeros((H, p0, tc), zdt)
    if p1 > 0:
        xpad_ref[p0 + H:Hp, :, :] = jnp.zeros((p1, Wp, tc), zdt)
        xpad_ref[p0:p0 + H, p0 + W:Wp, :] = jnp.zeros((H, p1, tc), zdt)
    xpad_ref[p0:p0 + H, p0:p0 + W, :] = x_ref[0].astype(zdt)

    if separable:
        # horizontal (W) pass
        acc = taps[0] * xpad_ref[:, 0:Wo, :].astype(jnp.float32)
        for j in range(1, kw):
            acc = acc + taps[j] * xpad_ref[:, j:j + Wo, :].astype(jnp.float32)
        row_ref[...] = acc
        # vertical (H) pass -- leading-axis slices, no relayout
        out = taps[0] * row_ref[0:Ho, :, :]
        for i in range(1, kh):
            out = out + taps[i] * row_ref[i:i + Ho, :, :]
    else:
        out = taps[0][0] * xpad_ref[0:Ho, 0:Wo, :].astype(jnp.float32)
        for i in range(kh):
            for j in range(kw):
                if i == 0 and j == 0:
                    continue
                out = out + taps[i][j] * xpad_ref[i:i + Ho, j:j + Wo, :].astype(jnp.float32)

    out = out * scale_ref[0]                       # fused per-channel scale
    o_ref[0] = out.astype(o_ref.dtype)


def blur_nhwc(x, blur_kernel, pad, upsample_factor=1, scale=None):
    """upfirdn2d(x, make_kernel(blur_kernel), pad=pad) for x in NHWC layout.
    If `scale` (N, C) is given, the output is multiplied per-channel by it."""
    k_np = np.asarray(blur_kernel, dtype=np.float64)
    if k_np.ndim == 1:
        t = k_np / k_np.sum()
        if upsample_factor > 1:
            t = t * upsample_factor                # each 1-D factor -> factor**2 total
        taps = [float(v) for v in t[::-1]]         # true convolution == flipped taps
        separable = True
        kh = kw = len(taps)
    else:
        k2 = k_np / k_np.sum()
        if upsample_factor > 1:
            k2 = k2 * (upsample_factor ** 2)
        k2 = k2[::-1, ::-1]
        taps = [[float(v) for v in row] for row in k2]
        separable = False
        kh, kw = k2.shape

    p0, p1 = pad
    N, H, W, C = x.shape
    if p0 < 0 or p1 < 0:                           # negative pad == crop
        x = x[:, max(-p0, 0):H - max(-p1, 0), max(-p0, 0):W - max(-p1, 0), :]
        N, H, W, C = x.shape
        p0, p1 = max(p0, 0), max(p1, 0)

    Hp, Wp = H + p0 + p1, W + p0 + p1
    Ho, Wo = Hp - kh + 1, Wp - kw + 1

    if scale is None:
        scale = jnp.ones((N, C), jnp.float32)
    scale3 = scale.reshape(N, 1, C).astype(jnp.float32)

    xbytes = x.dtype.itemsize

    def est(tc):
        return (2 * H * W * tc * xbytes            # x tile (double buffered)
                + 2 * Ho * Wo * tc * xbytes        # out tile (double buffered)
                + Hp * Wp * tc * xbytes            # xpad scratch
                + Hp * Wo * tc * 4                 # row scratch
                + 2 * Hp * Wo * tc * 4)            # tap-loop temporaries

    tc = _pick_channel_block(C, est)

    body = functools.partial(
        _blur_body, taps=taps, separable=separable, p0=p0, p1=p1,
        H=H, W=W, Hp=Hp, Wp=Wp, Ho=Ho, Wo=Wo, kh=kh, kw=kw)

    return pl.pallas_call(
        body,
        out_shape=jax.ShapeDtypeStruct((N, Ho, Wo, C), x.dtype),
        grid=(N, C // tc),
        in_specs=[pl.BlockSpec((1, 1, tc), lambda n, c: (n, 0, c)),
                  pl.BlockSpec((1, H, W, tc), lambda n, c: (n, 0, 0, c))],
        out_specs=pl.BlockSpec((1, Ho, Wo, tc), lambda n, c: (n, 0, 0, c)),
        scratch_shapes=[pltpu.VMEM((Hp, Wp, tc), x.dtype),
                        pltpu.VMEM((Hp, Wo, tc), jnp.float32)],
        compiler_params=pltpu.CompilerParams(
            dimension_semantics=("parallel", "parallel"),
            vmem_limit_bytes=_VMEM_LIMIT),
    )(scale3, x)


# --------------------------------------------------------------------------
# Modulated conv2d (stride 1, padding = k // 2), NHWC, per-sample grid.
# out[b, y, x, o] = demod[b, o] * sum_{ky,kx,i} (x[b, y+ky-p, x+kx-p, i] *
#                                                style[b, i]) * w0[ky, kx, i, o]
# --------------------------------------------------------------------------

def _modconv_body(style_ref, demod_ref, x_ref, w_ref, o_ref, xsh_ref, *,
                  H, W, Cin, tco, kh, kw, ph, pw, Ho, Wo):
    # style_ref: (1, 1, Cin)  demod_ref: (1, 1, tco)
    # x_ref: (1, H, W, Cin)   w_ref: (kh, kw*Cin, tco)   o_ref: (1, Ho, Wo, tco)
    # xsh_ref: (Hp, Wo, kw*Cin) f32 scratch holding the kw column-shifted,
    #          zero-padded, style-folded windows (built once per sample).
    Hp = H + 2 * ph

    @pl.when(pl.program_id(1) == 0)
    def _build_windows():
        xm = x_ref[0].astype(jnp.float32) * style_ref[0]       # style fold (VPU, f32)
        xm = xm.astype(xsh_ref.dtype)
        # zero only the row halo (top/bottom) across all kx slots
        if ph > 0:
            xsh_ref[0:ph, :, :] = jnp.zeros((ph, Wo, kw * Cin), xsh_ref.dtype)
            xsh_ref[ph + H:Hp, :, :] = jnp.zeros((Hp - ph - H, Wo, kw * Cin),
                                                 xsh_ref.dtype)
        for kx in range(kw):
            lo = max(0, pw - kx)
            hi = min(Wo, pw - kx + W)
            c0, c1 = kx * Cin, (kx + 1) * Cin
            if lo > 0:
                xsh_ref[ph:ph + H, 0:lo, c0:c1] = jnp.zeros((H, lo, Cin),
                                                            xsh_ref.dtype)
            if hi < Wo:
                xsh_ref[ph:ph + H, hi:Wo, c0:c1] = jnp.zeros((H, Wo - hi, Cin),
                                                             xsh_ref.dtype)
            src_lo = lo - (pw - kx)
            src_hi = hi - (pw - kx)
            xsh_ref[ph:ph + H, lo:hi, c0:c1] = xm[:, src_lo:src_hi, :]

    # kh MXU matmuls with K = kw*Cin; leading-axis (ky) slices are view-cheap.
    acc = jnp.zeros((Ho * Wo, tco), jnp.float32)
    for ky in range(kh):
        win = xsh_ref[ky:ky + Ho, :, :]                        # (Ho, Wo, kw*Cin)
        win = win.reshape(Ho * Wo, kw * Cin).astype(_MXU_DTYPE)
        acc = acc + jnp.dot(win, w_ref[ky],                    # (kw*Cin, tco) bf16
                            preferred_element_type=jnp.float32)

    out = acc.reshape(Ho, Wo, tco) * demod_ref[0]              # demodulate (f32)
    o_ref[0] = out.astype(o_ref.dtype)


def _modconv_pallas(x_nhwc, style_mod, demod, w0, padding):
    """x_nhwc (B,H,W,Cin), style_mod (B,Cin), demod (B,Cout), w0 (Cout,Cin,k,k)."""
    B, H, W, Cin = x_nhwc.shape
    Cout, _, kh, kw = w0.shape
    ph = pw = padding
    Hp, Wp = H + 2 * ph, W + 2 * pw
    Ho, Wo = Hp - kh + 1, Wp - kw + 1

    # (Cout,Cin,kh,kw) -> (kh, kw*Cin, Cout), bf16 operands for the MXU.
    w_kio = jnp.transpose(w0, (2, 3, 1, 0)).reshape(kh, kw * Cin, Cout)
    w_kio = w_kio.astype(_MXU_DTYPE)
    s3 = style_mod.reshape(B, 1, Cin).astype(jnp.float32)
    d3 = demod.reshape(B, 1, Cout).astype(jnp.float32)

    xbytes = x_nhwc.dtype.itemsize
    mb = jnp.dtype(_MXU_DTYPE).itemsize

    def est(tco):
        return (2 * H * W * Cin * xbytes           # x tile (double buffered)
                + 2 * kh * kw * Cin * tco * mb     # weight tile (double buffered)
                + 2 * Ho * Wo * tco * xbytes       # out tile (double buffered)
                + Hp * Wo * kw * Cin * 4           # shifted-window scratch (f32)
                + Ho * Wo * kw * Cin * mb          # bf16 window temporary
                + Ho * Wo * tco * 4)               # f32 accumulator

    tco = _pick_channel_block(Cout, est)

    body = functools.partial(
        _modconv_body, H=H, W=W, Cin=Cin, tco=tco,
        kh=kh, kw=kw, ph=ph, pw=pw, Ho=Ho, Wo=Wo)

    # Grid: b outer ("parallel"), Cout-block inner ("arbitrary") so the
    # shifted-window scratch built at c == 0 is reused across all Cout blocks
    # and the x tile is only DMA'd once per sample.
    return pl.pallas_call(
        body,
        out_shape=jax.ShapeDtypeStruct((B, Ho, Wo, Cout), x_nhwc.dtype),
        grid=(B, Cout // tco),
        in_specs=[
            pl.BlockSpec((1, 1, Cin), lambda b, c: (b, 0, 0)),
            pl.BlockSpec((1, 1, tco), lambda b, c: (b, 0, c)),
            pl.BlockSpec((1, H, W, Cin), lambda b, c: (b, 0, 0, 0)),
            pl.BlockSpec((kh, kw * Cin, tco), lambda b, c: (0, 0, c)),
        ],
        out_specs=pl.BlockSpec((1, Ho, Wo, tco), lambda b, c: (b, 0, 0, c)),
        scratch_shapes=[pltpu.VMEM((Hp, Wo, kw * Cin), jnp.float32)],
        compiler_params=pltpu.CompilerParams(
            dimension_semantics=("parallel", "arbitrary"),
            vmem_limit_bytes=_VMEM_LIMIT),
    )(s3, d3, x_nhwc, w_kio)


# --------------------------------------------------------------------------
# ModulatedConv2d forward (fused path of the PyTorch module).
# --------------------------------------------------------------------------

def modulated_conv2d_nhwc(x_nhwc, style, weight, mod_weight, mod_bias, *,
                          demodulate=True, upsample=False, downsample=False,
                          blur_kernel=(1, 3, 3, 1), eps=1e-8):
    """x_nhwc (B,H,W,Cin), style (B,style_dim), weight (1,Cout,Cin,k,k)."""
    B, H, W, Cin = x_nhwc.shape
    _, Cout, _, k, _ = weight.shape
    scale = 1.0 / math.sqrt(Cin * k * k)
    mod_scale = 1.0 / math.sqrt(mod_weight.shape[1])            # EqualLinear, lr_mul=1

    # modulation: EqualLinear(style_dim -> Cin), bias_init = 1
    s = jnp.matmul(style, (mod_weight * mod_scale).T,
                   precision=lax.Precision.HIGHEST) + mod_bias  # (B, Cin)
    w0 = (scale * weight[0]).astype(jnp.float32)                # (Cout, Cin, k, k)

    if demodulate:
        # rsqrt((s*s) @ sum_k(w0^2).T + eps) -- no (B,Cout,Cin,k,k) temporary.
        wsq = jnp.sum(w0 * w0, axis=(2, 3))                     # (Cout, Cin)
        demod = lax.rsqrt(jnp.matmul(s * s, wsq.T,
                                     precision=lax.Precision.HIGHEST) + eps)
    else:
        demod = jnp.ones((B, Cout), jnp.float32)

    if upsample:
        # TODO(synk): upsample path (stride-2 conv_transpose2d + Blur) is not
        # implemented as a Pallas kernel.
        raise NotImplementedError("upsample path not implemented")

    if downsample:
        factor = 2
        p = len(blur_kernel) - factor + (k - 1)
        # Pallas blur with the per-sample style fold fused into the output tile.
        xb = blur_nhwc(x_nhwc, blur_kernel, ((p + 1) // 2, p // 2), scale=s)
        # TODO(synk): the stride-2 conv below is plain XLA (shared weight,
        # batched NHWC conv); a fused Pallas stride-2 modconv kernel is pending.
        w_hwio = jnp.transpose(w0, (2, 3, 1, 0)).astype(_MXU_DTYPE)
        out = lax.conv_general_dilated(
            xb.astype(_MXU_DTYPE), w_hwio, (2, 2), 'VALID',
            dimension_numbers=('NHWC', 'HWIO', 'NHWC'),
            preferred_element_type=jnp.float32)
        out = out * demod[:, None, None, :]
        return out.astype(x_nhwc.dtype)

    return _modconv_pallas(x_nhwc, s, demod, w0, padding=k // 2)


def modulated_conv2d(x, style, weight, mod_weight, mod_bias, **kwargs):
    """NCHW wrapper matching the PyTorch module.  Prefer modulated_conv2d_nhwc
    end-to-end to avoid the two layout-transpose HBM passes."""
    out = modulated_conv2d_nhwc(jnp.transpose(x, (0, 2, 3, 1)), style, weight,
                                mod_weight, mod_bias, **kwargs)
    return jnp.transpose(out, (0, 3, 1, 2))


# --------------------------------------------------------------------------
# Pure-JAX references (faithful translation of the PyTorch module).
# --------------------------------------------------------------------------

def _blur_ref_nchw(x, blur_kernel, pad, upsample_factor=1):
    k = np.asarray(blur_kernel, np.float64)
    if k.ndim == 1:
        k = np.outer(k, k)
    k = k / k.sum()
    if upsample_factor > 1:
        k = k * (upsample_factor ** 2)
    kf = np.ascontiguousarray(k[::-1, ::-1]).astype(np.float32)
    p0, p1 = pad
    n, c, h, w = x.shape
    xp = jnp.pad(x, ((0, 0), (0, 0),
                     (max(p0, 0), max(p1, 0)), (max(p0, 0), max(p1, 0))))
    hp, wp = xp.shape[2], xp.shape[3]
    xp = xp[:, :, max(-p0, 0):hp - max(-p1, 0), max(-p0, 0):wp - max(-p1, 0)]
    wgt = jnp.broadcast_to(jnp.asarray(kf)[None, None],
                           (c, 1, kf.shape[0], kf.shape[1]))
    return lax.conv_general_dilated(
        xp, wgt, (1, 1), 'VALID',
        dimension_numbers=('NCHW', 'OIHW', 'NCHW'),
        feature_group_count=c, precision=lax.Precision.HIGHEST)


def _modulated_conv2d_ref(x, style, weight, mod_weight, mod_bias, *,
                          demodulate=True, downsample=False,
                          blur_kernel=(1, 3, 3, 1), eps=1e-8):
    B, Cin, H, W = x.shape
    _, Cout, _, k, _ = weight.shape
    scale = 1.0 / math.sqrt(Cin * k * k)
    mod_scale = 1.0 / math.sqrt(mod_weight.shape[1])
    s = jnp.matmul(style, (mod_weight * mod_scale).T,
                   precision=lax.Precision.HIGHEST) + mod_bias
    w = scale * weight * s[:, None, :, None, None]              # (B,Cout,Cin,k,k)
    if demodulate:
        demod = lax.rsqrt(jnp.sum(w * w, axis=(2, 3, 4)) + eps)
        w = w * demod[:, :, None, None, None]
    w = w.reshape(B * Cout, Cin, k, k)
    if downsample:
        factor = 2
        p = len(blur_kernel) - factor + (k - 1)
        x = _blur_ref_nchw(x, blur_kernel, ((p + 1) // 2, p // 2))
        xf = x.reshape(1, B * Cin, x.shape[2], x.shape[3])
        out = lax.conv_general_dilated(
            xf, w, (2, 2), 'VALID',
            dimension_numbers=('NCHW', 'OIHW', 'NCHW'),
            feature_group_count=B, precision=lax.Precision.HIGHEST)
    else:
        xf = x.reshape(1, B * Cin, H, W)
        out = lax.conv_general_dilated(
            xf, w, (1, 1), [(k // 2, k // 2), (k // 2, k // 2)],
            dimension_numbers=('NCHW', 'OIHW', 'NCHW'),
            feature_group_count=B, precision=lax.Precision.HIGHEST)
    return out.reshape(B, Cout, out.shape[2], out.shape[3])


if __name__ == "__main__":
    key = jax.random.PRNGKey(0)
    k_x, k_s, k_w, k_m = jax.random.split(key, 4)
    B, Cin, Cout, K, SDIM, H, W = 2, 4, 8, 3, 32, 16, 16

    x = jax.random.normal(k_x, (B, Cin, H, W), dtype=jnp.float32)
    style = jax.random.normal(k_s, (B, SDIM), dtype=jnp.float32)
    weight = jax.random.normal(k_w, (1, Cout, Cin, K, K), dtype=jnp.float32)
    mod_weight = jax.random.normal(k_m, (Cin, SDIM), dtype=jnp.float32)
    mod_bias = jnp.ones((Cin,), dtype=jnp.float32)              # bias_init = 1
    blur_kernel = (1, 3, 3, 1)

    # Default fused path (no up/down sampling): Pallas modulated conv.
    out = modulated_conv2d(x, style, weight, mod_weight, mod_bias,
                           demodulate=True, blur_kernel=blur_kernel)
    out = jax.block_until_ready(out)
    ref = _modulated_conv2d_ref(x, style, weight, mod_weight, mod_bias,
                                demodulate=True, downsample=False,
                                blur_kernel=blur_kernel)
    assert out.shape == ref.shape == (B, Cout, H, W), out.shape
    err = float(jnp.max(jnp.abs(out - ref)))
    # bf16 MXU operands (f32 accumulation) vs. a HIGHEST-precision f32 reference.
    assert jnp.allclose(out, ref, atol=5e-2, rtol=5e-2), err

    # Downsample path: Pallas blur (style fused) + stride-2 shared-weight conv.
    out_d = modulated_conv2d(x, style, weight, mod_weight, mod_bias,
                             demodulate=True, downsample=True,
                             blur_kernel=blur_kernel)
    out_d = jax.block_until_ready(out_d)
    ref_d = _modulated_conv2d_ref(x, style, weight, mod_weight, mod_bias,
                                  demodulate=True, downsample=True,
                                  blur_kernel=blur_kernel)
    assert out_d.shape == ref_d.shape == (B, Cout, H // 2, W // 2), out_d.shape
    err_d = float(jnp.max(jnp.abs(out_d - ref_d)))
    assert jnp.allclose(out_d, ref_d, atol=5e-2, rtol=5e-2), err_d

    print("KERNEL_OK")
</pallas_src>

<mosaic_0001>
module attributes {stable_mosaic.version = 11 : i64} {
  func.func @_modconv_body(%arg0: i32, %arg1: i32, %arg2: memref<1x1x4xf32, #tpu.memory_space<vmem>>, %arg3: memref<1x1x8xf32, #tpu.memory_space<vmem>>, %arg4: memref<1x16x16x4xf32, #tpu.memory_space<vmem>>, %arg5: memref<3x12x8xbf16, #tpu.memory_space<vmem>>, %arg6: memref<1x16x16x8xf32, #tpu.memory_space<vmem>>, %arg7: memref<18x16x12xf32, #tpu.memory_space<vmem>>) attributes {dimension_semantics = [#tpu.dimension_semantics<parallel>, #tpu.dimension_semantics<arbitrary>], iteration_bounds = array<i64: 2, 1>, scalar_prefetch = 0 : i64, scratch_operands = 1 : i64, tpu.core_type = #tpu.core_type<tc>, window_params = [{transform_indices = @transform_0, window_bounds = array<i64: 1, 1, 4>}, {transform_indices = @transform_1, window_bounds = array<i64: 1, 1, 8>}, {transform_indices = @transform_2, window_bounds = array<i64: 1, 16, 16, 4>}, {transform_indices = @transform_3, window_bounds = array<i64: 3, 12, 8>}, {transform_indices = @transform_4, window_bounds = array<i64: 1, 16, 16, 8>}]} {
    %c0_i32 = arith.constant 0 : i32
    %0 = arith.cmpi eq, %arg1, %c0_i32 : i32
    %1 = arith.extui %0 : i1 to i32
    %c0_i32_0 = arith.constant 0 : i32
    %2 = arith.cmpi ne, %1, %c0_i32_0 : i32
    scf.if %2 {
      %c0_26 = arith.constant 0 : index
      %c0_27 = arith.constant 0 : index
      %c0_28 = arith.constant 0 : index
      %c0_29 = arith.constant 0 : index
      %34 = vector.load %arg4[%c0_26, %c0_27, %c0_28, %c0_29] : memref<1x16x16x4xf32, #tpu.memory_space<vmem>>, vector<1x16x16x4xf32>
      %35 = vector.shape_cast %34 : vector<1x16x16x4xf32> to vector<16x16x4xf32>
      %c0_30 = arith.constant 0 : index
      %c0_31 = arith.constant 0 : index
      %c0_32 = arith.constant 0 : index
      %36 = vector.load %arg2[%c0_30, %c0_31, %c0_32] : memref<1x1x4xf32, #tpu.memory_space<vmem>>, vector<1x1x4xf32>
      %37 = vector.shape_cast %36 : vector<1x1x4xf32> to vector<1x4xf32>
      %38 = vector.shape_cast %37 : vector<1x4xf32> to vector<1x1x4xf32>
      %39 = vector.broadcast %38 : vector<1x1x4xf32> to vector<16x16x4xf32>
      %40 = arith.mulf %35, %39 : vector<16x16x4xf32>
      %cst_33 = arith.constant 0.000000e+00 : f32
      %41 = vector.broadcast %cst_33 : f32 to vector<1x16x12xf32>
      %c0_34 = arith.constant 0 : index
      %c0_35 = arith.constant 0 : index
      %c0_36 = arith.constant 0 : index
      %42 = vector.load %arg7[%c0_34, %c0_35, %c0_36] : memref<18x16x12xf32, #tpu.memory_space<vmem>>, vector<1x16x12xf32>
      tpu.vector_store %arg7[%c0_34, %c0_35, %c0_36], %41 {strides = array<i32>} : memref<18x16x12xf32, #tpu.memory_space<vmem>>, vector<1x16x12xf32>,
      %cst_37 = arith.constant 0.000000e+00 : f32
      %43 = vector.broadcast %cst_37 : f32 to vector<1x16x12xf32>
      %c17 = arith.constant 17 : index
      %c0_38 = arith.constant 0 : index
      %c0_39 = arith.constant 0 : index
      %44 = vector.load %arg7[%c17, %c0_38, %c0_39] : memref<18x16x12xf32, #tpu.memory_space<vmem>>, vector<1x16x12xf32>
      tpu.vector_store %arg7[%c17, %c0_38, %c0_39], %43 {strides = array<i32>} : memref<18x16x12xf32, #tpu.memory_space<vmem>>, vector<1x16x12xf32>,
      %cst_40 = arith.constant 0.000000e+00 : f32
      %45 = vector.broadcast %cst_40 : f32 to vector<16x1x4xf32>
      %c1_41 = arith.constant 1 : index
      %c0_42 = arith.constant 0 : index
      %c0_43 = arith.constant 0 : index
      %46 = vector.load %arg7[%c1_41, %c0_42, %c0_43] : memref<18x16x12xf32, #tpu.memory_space<vmem>>, vector<16x1x4xf32>
      tpu.vector_store %arg7[%c1_41, %c0_42, %c0_43], %45 {strides = array<i32>} : memref<18x16x12xf32, #tpu.memory_space<vmem>>, vector<16x1x4xf32>,
      %47 = vector.extract_strided_slice %40 {offsets = [0, 0, 0], sizes = [16, 15, 4], strides = [1, 1, 1]} : vector<16x16x4xf32> to vector<16x15x4xf32>
      %c1_44 = arith.constant 1 : index
      %c1_45 = arith.constant 1 : index
      %c0_46 = arith.constant 0 : index
      %48 = vector.load %arg7[%c1_44, %c1_45, %c0_46] : memref<18x16x12xf32, #tpu.memory_space<vmem>>, vector<16x15x4xf32>
      tpu.vector_store %arg7[%c1_44, %c1_45, %c0_46], %47 {strides = array<i32>} : memref<18x16x12xf32, #tpu.memory_space<vmem>>, vector<16x15x4xf32>,
      %c1_47 = arith.constant 1 : index
      %c0_48 = arith.constant 0 : index
      %c4 = arith.constant 4 : index
      %49 = vector.load %arg7[%c1_47, %c0_48, %c4] : memref<18x16x12xf32, #tpu.memory_space<vmem>>, vector<16x16x4xf32>
      tpu.vector_store %arg7[%c1_47, %c0_48, %c4], %40 {strides = array<i32>} : memref<18x16x12xf32, #tpu.memory_space<vmem>>, vector<16x16x4xf32>,
      %cst_49 = arith.constant 0.000000e+00 : f32
      %50 = vector.broadcast %cst_49 : f32 to vector<16x1x4xf32>
      %c1_50 = arith.constant 1 : index
      %c15 = arith.constant 15 : index
      %c8 = arith.constant 8 : index
      %51 = vector.load %arg7[%c1_50, %c15, %c8] : memref<18x16x12xf32, #tpu.memory_space<vmem>>, vector<16x1x4xf32>
      tpu.vector_store %arg7[%c1_50, %c15, %c8], %50 {strides = array<i32>} : memref<18x16x12xf32, #tpu.memory_space<vmem>>, vector<16x1x4xf32>,
      %52 = vector.extract_strided_slice %40 {offsets = [0, 1, 0], sizes = [16, 15, 4], strides = [1, 1, 1]} : vector<16x16x4xf32> to vector<16x15x4xf32>
      %c1_51 = arith.constant 1 : index
      %c0_52 = arith.constant 0 : index
      %c8_53 = arith.constant 8 : index
      %53 = vector.load %arg7[%c1_51, %c0_52, %c8_53] : memref<18x16x12xf32, #tpu.memory_space<vmem>>, vector<16x15x4xf32>
      tpu.vector_store %arg7[%c1_51, %c0_52, %c8_53], %52 {strides = array<i32>} : memref<18x16x12xf32, #tpu.memory_space<vmem>>, vector<16x15x4xf32>,
    } else {
    }
    %cst = arith.constant 0.000000e+00 : f32
    %3 = vector.broadcast %cst : f32 to vector<256x8xf32>
    %c0 = arith.constant 0 : index
    %c0_1 = arith.constant 0 : index
    %c0_2 = arith.constant 0 : index
    %4 = vector.load %arg7[%c0, %c0_1, %c0_2] : memref<18x16x12xf32, #tpu.memory_space<vmem>>, vector<16x16x12xf32>
    %5 = vector.shape_cast %4 : vector<16x16x12xf32> to vector<256x12xf32>
    %6 = arith.truncf %5 : vector<256x12xf32> to vector<256x12xbf16>
    %c0_3 = arith.constant 0 : index
    %c0_4 = arith.constant 0 : index
    %c0_5 = arith.constant 0 : index
    %7 = vector.load %arg5[%c0_3, %c0_4, %c0_5] : memref<3x12x8xbf16, #tpu.memory_space<vmem>>, vector<1x12x8xbf16>
    %8 = vector.shape_cast %7 : vector<1x12x8xbf16> to vector<12x8xbf16>
    %cst_6 = arith.constant dense<0.000000e+00> : vector<256x8xf32>
    %9 = tpu.matmul %6, %8, %cst_6 {dimension_numbers = #tpu.dot_dimension_numbers<[1], [0], [0], [1], [0, 0, 1, 1], [], []>} : vector<256x12xbf16>, vector<12x8xbf16>, vector<256x8xf32> -> vector<256x8xf32>
    %10 = arith.addf %3, %9 : vector<256x8xf32>
    %c1 = arith.constant 1 : index
    %c0_7 = arith.constant 0 : index
    %c0_8 = arith.constant 0 : index
    %11 = vector.load %arg7[%c1, %c0_7, %c0_8] : memref<18x16x12xf32, #tpu.memory_space<vmem>>, vector<16x16x12xf32>
    %12 = vector.shape_cast %11 : vector<16x16x12xf32> to vector<256x12xf32>
    %13 = arith.truncf %12 : vector<256x12xf32> to vector<256x12xbf16>
    %c1_9 = arith.constant 1 : index
    %c0_10 = arith.constant 0 : index
    %c0_11 = arith.constant 0 : index
    %14 = vector.load %arg5[%c1_9, %c0_10, %c0_11] : memref<3x12x8xbf16, #tpu.memory_space<vmem>>, vector<1x12x8xbf16>
    %15 = vector.shape_cast %14 : vector<1x12x8xbf16> to vector<12x8xbf16>
    %cst_12 = arith.constant dense<0.000000e+00> : vector<256x8xf32>
    %16 = tpu.matmul %13, %15, %cst_12 {dimension_numbers = #tpu.dot_dimension_numbers<[1], [0], [0], [1], [0, 0, 1, 1], [], []>} : vector<256x12xbf16>, vector<12x8xbf16>, vector<256x8xf32> -> vector<256x8xf32>
    %17 = arith.addf %10, %16 : vector<256x8xf32>
    %c2 = arith.constant 2 : index
    %c0_13 = arith.constant 0 : index
    %c0_14 = arith.constant 0 : index
    %18 = vector.load %arg7[%c2, %c0_13, %c0_14] : memref<18x16x12xf32, #tpu.memory_space<vmem>>, vector<16x16x12xf32>
    %19 = vector.shape_cast %18 : vector<16x16x12xf32> to vector<256x12xf32>
    %20 = arith.truncf %19 : vector<256x12xf32> to vector<256x12xbf16>
    %c2_15 = arith.constant 2 : index
    %c0_16 = arith.constant 0 : index
    %c0_17 = arith.constant 0 : index
    %21 = vector.load %arg5[%c2_15, %c0_16, %c0_17] : memref<3x12x8xbf16, #tpu.memory_space<vmem>>, vector<1x12x8xbf16>
    %22 = vector.shape_cast %21 : vector<1x12x8xbf16> to vector<12x8xbf16>
    %cst_18 = arith.constant dense<0.000000e+00> : vector<256x8xf32>
    %23 = tpu.matmul %20, %22, %cst_18 {dimension_numbers = #tpu.dot_dimension_numbers<[1], [0], [0], [1], [0, 0, 1, 1], [], []>} : vector<256x12xbf16>, vector<12x8xbf16>, vector<256x8xf32> -> vector<256x8xf32>
    %24 = arith.addf %17, %23 : vector<256x8xf32>
    %25 = vector.shape_cast %24 : vector<256x8xf32> to vector<16x16x8xf32>
    %c0_19 = arith.constant 0 : index
    %c0_20 = arith.constant 0 : index
    %c0_21 = arith.constant 0 : index
    %26 = vector.load %arg3[%c0_19, %c0_20, %c0_21] : memref<1x1x8xf32, #tpu.memory_space<vmem>>, vector<1x1x8xf32>
    %27 = vector.shape_cast %26 : vector<1x1x8xf32> to vector<1x8xf32>
    %28 = vector.shape_cast %27 : vector<1x8xf32> to vector<1x1x8xf32>
    %29 = vector.broadcast %28 : vector<1x1x8xf32> to vector<16x16x8xf32>
    %30 = arith.mulf %25, %29 : vector<16x16x8xf32>
    %c0_22 = arith.constant 0 : index
    %c0_23 = arith.constant 0 : index
    %c0_24 = arith.constant 0 : index
    %c0_25 = arith.constant 0 : index
    %31 = vector.load %arg6[%c0_22, %c0_23, %c0_24, %c0_25] : memref<1x16x16x8xf32, #tpu.memory_space<vmem>>, vector<1x16x16x8xf32>
    %32 = vector.shape_cast %31 : vector<1x16x16x8xf32> to vector<16x16x8xf32>
    %33 = vector.shape_cast %30 : vector<16x16x8xf32> to vector<1x16x16x8xf32>
    tpu.vector_store %arg6[%c0_22, %c0_23, %c0_24, %c0_25], %33 {strides = array<i32>} : memref<1x16x16x8xf32, #tpu.memory_space<vmem>>, vector<1x16x16x8xf32>,
    return
  }
  func.func @transform_0(%arg0: i32, %arg1: i32) -> (i32, i32, i32) {
    %c0_i32 = arith.constant 0 : i32
    %c0_i32_0 = arith.constant 0 : i32
    %c0_i32_1 = arith.constant 0 : i32
    return %arg0, %c0_i32, %c0_i32_0 : i32, i32, i32
  }
  func.func @transform_1(%arg0: i32, %arg1: i32) -> (i32, i32, i32) {
    %c0_i32 = arith.constant 0 : i32
    %c0_i32_0 = arith.constant 0 : i32
    return %arg0, %c0_i32, %arg1 : i32, i32, i32
  }
  func.func @transform_2(%arg0: i32, %arg1: i32) -> (i32, i32, i32, i32) {
    %c0_i32 = arith.constant 0 : i32
    %c0_i32_0 = arith.constant 0 : i32
    %c0_i32_1 = arith.constant 0 : i32
    %c0_i32_2 = arith.constant 0 : i32
    return %arg0, %c0_i32, %c0_i32_0, %c0_i32_1 : i32, i32, i32, i32
  }
  func.func @transform_3(%arg0: i32, %arg1: i32) -> (i32, i32, i32) {
    %c0_i32 = arith.constant 0 : i32
    %c0_i32_0 = arith.constant 0 : i32
    %c0_i32_1 = arith.constant 0 : i32
    return %c0_i32, %c0_i32_0, %arg1 : i32, i32, i32
  }
  func.func @transform_4(%arg0: i32, %arg1: i32) -> (i32, i32, i32, i32) {
    %c0_i32 = arith.constant 0 : i32
    %c0_i32_0 = arith.constant 0 : i32
    %c0_i32_1 = arith.constant 0 : i32
    return %arg0, %c0_i32, %c0_i32_0, %arg1 : i32, i32, i32, i32
  }
}

</mosaic_0001>

<llo_original>
// kernel: tpu_custom_call.1
$region0: #{tpu_custom_call.1}
  #allocation0 [shape = 'u32[]', space=smem, size = 0x4, offset = 0x4, fixed_abs, tag = 'smem constant byte address 0x4 - core index']
  #allocation1 [shape = 'u32[144,128]{1,0:T(1,128)}', space=vmem, size = 0x12000, scoped, tag = 'internal scratch']
  #allocation2 [shape = 'f32[18,16,12]{2,1,0:T(8,128)}', space=vmem, size = 0x24000, scoped, tag = 'scratch operand']
  %s0 = inlined_call_operand.vmem [shape: f32[2,1,4], index: 0, kind: input, shape index: {}]
  %s1 = inlined_call_operand.vmem [shape: f32[2,1,8], index: 1, kind: input, shape index: {}]
  %s2 = inlined_call_operand.vmem [shape: f32[2,16,16,4], index: 2, kind: input, shape index: {}]
  %s3 = inlined_call_operand.vmem [shape: bf16[3,12,8], index: 3, kind: input, shape index: {}]
  %s4 = inlined_call_operand.vmem [shape: f32[2,16,16,8], index: 4, kind: output, shape index: {}]
  %s5 = sld [smem:[#allocation0]]
  $region53: #{tpu_custom_call.1} parent=0
    _
  %s7 = ssub.s32 1, %s5
  %s8 = scalar_select 0, %s7, %s5
  loop: start=0, step=1, limit=4
  $region2: #{tpu_custom_call.1} parent=0 // loop_pre_header
    _
  $region3: #{tpu_custom_call.1} parent=0 // loop_header
    %s10 = sphi 0, %s14
    %p11 = scmp.ge.s32.totalorder %s10, 4
    %s17 = sphi 0, %s29
    %s18 = sphi 0, %s25
    %s19 = sphi 0, %s17
    %s20 = sphi 0, %s18
    %s21 = sphi 0, %s19
    %s22 = sphi 0, %s20
    %s32 = sphi 0, %s34
    %s35 = sphi 0, %s32
    %s36 = sphi 0, %s35
    %s52 = sphi 0, %s36
    %s60 = sphi 0, %s62
    %s63 = sphi 0, %s60
    %s64 = sphi 0, %s63
    %s80 = sphi 0, %s64
    %s86 = sphi 0, %s88
    %s89 = sphi 0, %s86
    %s90 = sphi 0, %s89
    %s106 = sphi 0, %s90
    %s112 = sphi 0, %s114
    %s115 = sphi 0, %s112
    %s116 = sphi 0, %s115
    %s132 = sphi 0, %s116
    %s140 = sphi 0, %s142
    %s143 = sphi 0, %s140
    %s144 = sphi 0, %s143
    %s160 = sphi 0, %s144
  $region4: #{tpu_custom_call.1} parent=0 // loop_header_branch
    %13 = sbr.rel (%p11) target = $region8
  $region5: #{tpu_custom_call.1} parent=0 // loop_body
    %s15 = ssub.s32 %s10, 1
    %s16 = ssub.s32 %s10, 2
    %s23 = sadd.s32 1, %s18
    %p24 = scmp.ge.s32.totalorder %s23, 1
    %s25 = scalar_select %p24, 0, %s23
    %s26 = sadd.s32 1, %s17
    %s27 = scalar_select %p24, %s26, %s17
    %p28 = scmp.ge.s32.totalorder %s27, 2
    %s29 = scalar_select %p28, 0, %s27
    %s30 = ssub.s32 %s17, %s29
    %p31 = scmp.eq.s32.totalorder %s30, 0
    %s33 = sadd.s32 %s32, 1
    %s34 = scalar_select %p31, %s32, %s33
    %p37 = pneg %p31
    %p38 = scmp.eq.s32.totalorder %s10, 1
    %p39 = por %p37, %p38
    %p40 = scmp.ne.s32.totalorder %s32, %s35
    %p41 = scmp.eq.s32.totalorder %s10, 0
    %p42 = por %p40, %p41
    %p43 = scmp.ne.s32.totalorder %s32, %s35
    %p44 = scmp.eq.s32.totalorder %s15, 1
    %p45 = por %p43, %p44
    %p46 = scmp.ne.s32.totalorder %s35, %s36
    %p47 = scmp.eq.s32.totalorder %s15, 0
    %p48 = por %p46, %p47
    %p49 = scmp.ne.s32.totalorder %s35, %s36
    %p50 = scmp.eq.s32.totalorder %s16, 1
    %p51 = por %p49, %p50
    %p53 = scmp.ne.s32.totalorder %s36, %s52
    %p54 = scmp.eq.s32.totalorder %s16, 0
    %p55 = por %p53, %p54
    %s56 = ssub.s32 %s17, %s29
    %s57 = ssub.s32 %s18, %s25
    %s58 = sor.u32 %s56, %s57
    %p59 = scmp.eq.s32.totalorder %s58, 0
    %s61 = sadd.s32 %s60, 1
    %s62 = scalar_select %p59, %s60, %s61
    %p65 = pneg %p59
    %p66 = scmp.eq.s32.totalorder %s10, 1
    %p67 = por %p65, %p66
    %p68 = scmp.ne.s32.totalorder %s60, %s63
    %p69 = scmp.eq.s32.totalorder %s10, 0
    %p70 = por %p68, %p69
    %p71 = scmp.ne.s32.totalorder %s60, %s63
    %p72 = scmp.eq.s32.totalorder %s15, 1
    %p73 = por %p71, %p72
    %p74 = scmp.ne.s32.totalorder %s63, %s64
    %p75 = scmp.eq.s32.totalorder %s15, 0
    %p76 = por %p74, %p75
    %p77 = scmp.ne.s32.totalorder %s63, %s64
    %p78 = scmp.eq.s32.totalorder %s16, 1
    %p79 = por %p77, %p78
    %p81 = scmp.ne.s32.totalorder %s64, %s80
    %p82 = scmp.eq.s32.totalorder %s16, 0
    %p83 = por %p81, %p82
    %s84 = ssub.s32 %s17, %s29
    %p85 = scmp.eq.s32.totalorder %s84, 0
    %s87 = sadd.s32 %s86, 1
    %s88 = scalar_select %p85, %s86, %s87
    %p91 = pneg %p85
    %p92 = scmp.eq.s32.totalorder %s10, 1
    %p93 = por %p91, %p92
    %p94 = scmp.ne.s32.totalorder %s86, %s89
    %p95 = scmp.eq.s32.totalorder %s10, 0
    %p96 = por %p94, %p95
    %p97 = scmp.ne.s32.totalorder %s86, %s89
    %p98 = scmp.eq.s32.totalorder %s15, 1
    %p99 = por %p97, %p98
    %p100 = scmp.ne.s32.totalorder %s89, %s90
    %p101 = scmp.eq.s32.totalorder %s15, 0
    %p102 = por %p100, %p101
    %p103 = scmp.ne.s32.totalorder %s89, %s90
    %p104 = scmp.eq.s32.totalorder %s16, 1
    %p105 = por %p103, %p104
    %p107 = scmp.ne.s32.totalorder %s90, %s106
    %p108 = scmp.eq.s32.totalorder %s16, 0
    %p109 = por %p107, %p108
    %s110 = ssub.s32 %s18, %s25
    %p111 = scmp.eq.s32.totalorder %s110, 0
    %s113 = sadd.s32 %s112, 1
    %s114 = scalar_select %p111, %s112, %s113
    %p117 = pneg %p111
    %p118 = scmp.eq.s32.totalorder %s10, 1
    %p119 = por %p117, %p118
    %p120 = scmp.ne.s32.totalorder %s112, %s115
    %p121 = scmp.eq.s32.totalorder %s10, 0
    %p122 = por %p120, %p121
    %p123 = scmp.ne.s32.totalorder %s112, %s115
    %p124 = scmp.eq.s32.totalorder %s15, 1
    %p125 = por %p123, %p124
    %p126 = scmp.ne.s32.totalorder %s115, %s116
    %p127 = scmp.eq.s32.totalorder %s15, 0
    %p128 = por %p126, %p127
    %p129 = scmp.ne.s32.totalorder %s115, %s116
    %p130 = scmp.eq.s32.totalorder %s16, 1
    %p131 = por %p129, %p130
    %p133 = scmp.ne.s32.totalorder %s116, %s132
    %p134 = scmp.eq.s32.totalorder %s16, 0
    %p135 = por %p133, %p134
    %s136 = ssub.s32 %s17, %s29
    %s137 = ssub.s32 %s18, %s25
    %s138 = sor.u32 %s136, %s137
    %p139 = scmp.eq.s32.totalorder %s138, 0
    %s141 = sadd.s32 %s140, 1
    %s142 = scalar_select %p139, %s140, %s141
    %p145 = pneg %p139
    %p146 = scmp.eq.s32.totalorder %s10, 1
    %p147 = por %p145, %p146
    %p148 = scmp.ne.s32.totalorder %s140, %s143
    %p149 = scmp.eq.s32.totalorder %s10, 0
    %p150 = por %p148, %p149
    %p151 = scmp.ne.s32.totalorder %s140, %s143
    %p152 = scmp.eq.s32.totalorder %s15, 1
    %p153 = por %p151, %p152
    %p154 = scmp.ne.s32.totalorder %s143, %s144
    %p155 = scmp.eq.s32.totalorder %s15, 0
    %p156 = por %p154, %p155
    %p157 = scmp.ne.s32.totalorder %s143, %s144
    %p158 = scmp.eq.s32.totalorder %s16, 1
    %p159 = por %p157, %p158
    %p161 = scmp.ne.s32.totalorder %s144, %s160
    %p162 = scmp.eq.s32.totalorder %s16, 0
    %p163 = por %p161, %p162
    %p164 = scmp.le.s32.totalorder 1, %s10
    %p165 = scmp.lt.s32.totalorder %s10, 3
    %p166 = pnand %p164, %p165
    %p167 = pneg %p166
    // Predicated region
    $region9: #{tpu_custom_call.1} parent=5 // pred_check
      _
    $region10: #{tpu_custom_call.1} parent=5 // pred_check_branch
      %169 = sbr.rel (%p166) target = $region12
    $region11: #{tpu_custom_call.1} parent=5 // pred_region
      %s170 = ssub.s32 %s10, 1
      // Predicated region
      $region13: #{tpu_custom_call.1} parent=11 // pred_check
        %p171 = pneg %p128
      $region14: #{tpu_custom_call.1} parent=11 // pred_check_branch
        %173 = sbr.rel (%p171) target = $region16
      $region15: #{tpu_custom_call.1} parent=11 // pred_region
        %p174 = scmp.lt.s32.totalorder %s20, 0
        %s175 = scalar_select %p174, %s20, 0
        %s176 = smul.addr %s175, 4
        %s177 = scalar_lea.vmem %s3, %s176
      $region16: #{tpu_custom_call.1} parent=11 // pred_fallthru
        _
    $region12: #{tpu_custom_call.1} parent=5 // pred_fallthru
      _
    %p178 = scmp.lt.s32.totalorder %s10, 2
    // Predicated region
    $region17: #{tpu_custom_call.1} parent=5 // pred_check
      %p179 = pneg %p178
    $region18: #{tpu_custom_call.1} parent=5 // pred_check_branch
      %181 = sbr.rel (%p179) target = $region20
    $region19: #{tpu_custom_call.1} parent=5 // pred_region
      // Predicated region
      $region21: #{tpu_custom_call.1} parent=19 // pred_check
        %p182 = pneg %p42
      $region22: #{tpu_custom_call.1} parent=19 // pred_check_branch
        %184 = sbr.rel (%p182) target = $region24
      $region23: #{tpu_custom_call.1} parent=19 // pred_region
        %p185 = scmp.lt.s32.totalorder %s17, 1
        %s186 = scalar_select %p185, %s17, 1
        %s187 = scalar_lea.vmem %s0, %s186
      $region24: #{tpu_custom_call.1} parent=19 // pred_fallthru
        _
      // Predicated region
      $region25: #{tpu_custom_call.1} parent=19 // pred_check
        %p188 = pneg %p70
      $region26: #{tpu_custom_call.1} parent=19 // pred_check_branch
        %190 = sbr.rel (%p188) target = $region28
      $region27: #{tpu_custom_call.1} parent=19 // pred_region
        %p191 = scmp.lt.s32.totalorder %s17, 1
        %s192 = scalar_select %p191, %s17, 1
        %p193 = scmp.lt.s32.totalorder %s18, 0
        %s194 = scalar_select %p193, %s18, 0
        %s195 = sadd.s32 %s194, %s192
        %s196 = scalar_lea.vmem %s1, %s195
      $region28: #{tpu_custom_call.1} parent=19 // pred_fallthru
        _
      // Predicated region
      $region29: #{tpu_custom_call.1} parent=19 // pred_check
        %p197 = pneg %p96
      $region30: #{tpu_custom_call.1} parent=19 // pred_check_branch
        %199 = sbr.rel (%p197) target = $region32
      $region31: #{tpu_custom_call.1} parent=19 // pred_region
        %p200 = scmp.lt.s32.totalorder %s17, 1
        %s201 = scalar_select %p200, %s17, 1
        %s202 = smul.addr %s201, 32
        %s203 = smul.addr %s202, 8
        %s204 = scalar_lea.vmem %s2, %s203
      $region32: #{tpu_custom_call.1} parent=19 // pred_fallthru
        _
    $region20: #{tpu_custom_call.1} parent=5 // pred_fallthru
      _
    %p205 = scmp.le.s32.totalorder 1, %s10
    %p206 = scmp.lt.s32.totalorder %s10, 3
    %p207 = pnand %p205, %p206
    %p208 = pneg %p207
    // Predicated region
    $region33: #{tpu_custom_call.1} parent=5 // pred_check
      _
    $region34: #{tpu_custom_call.1} parent=5 // pred_check_branch
      %210 = sbr.rel (%p207) target = $region36
    $region35: #{tpu_custom_call.1} parent=5 // pred_region
      %s211 = ssub.s32 %s10, 1
      %p212 = scmp.lt.s32.totalorder %s19, 1
      %s213 = scalar_select %p212, %s19, 1
      %s214 = scalar_lea.vmem %s0, %s213
      %p215 = pneg %p48
      %p216 = pneg %p45
      %p217 = scmp.lt.s32.totalorder %s19, 1
      %s218 = scalar_select %p217, %s19, 1
      %p219 = scmp.lt.s32.totalorder %s20, 0
      %s220 = scalar_select %p219, %s20, 0
      %s221 = sadd.s32 %s220, %s218
      %s222 = scalar_lea.vmem %s1, %s221
      %p223 = pneg %p76
      %p224 = pneg %p73
      %p225 = scmp.lt.s32.totalorder %s19, 1
      %s226 = scalar_select %p225, %s19, 1
      %s227 = smul.addr %s226, 32
      %s228 = smul.addr %s227, 8
      %s229 = scalar_lea.vmem %s2, %s228
      %p230 = pneg %p102
      %p231 = pneg %p99
      %p232 = scmp.lt.s32.totalorder %s20, 0
      %s233 = scalar_select %p232, %s20, 0
      %s234 = smul.addr %s233, 4
      %s235 = scalar_lea.vmem %s3, %s234
      %p236 = pneg %p128
      %p237 = pneg %p125
      %p238 = pneg %p156
      %p239 = pneg %p153
      %p240 = scmp.lt.s32.totalorder %s19, 1
      %s241 = scalar_select %p240, %s19, 1
      %p242 = scmp.lt.s32.totalorder %s20, 0
      %s243 = scalar_select %p242, %s20, 0
      %s244 = smul.addr %s241, 32
      %s245 = sadd.s32 %s243, %s244
      %s246 = smul.addr %s245, 8
      %s247 = scalar_lea.vmem %s4, %s246
      %p248 = scmp.lt.s32.totalorder %s19, 1
      %s249 = scalar_select %p248, %s19, 1
      %s250 = scalar_lea.vmem %s0, %s249
      %p251 = scmp.lt.s32.totalorder %s19, 1
      %s252 = scalar_select %p251, %s19, 1
      %p253 = scmp.lt.s32.totalorder %s20, 0
      %s254 = scalar_select %p253, %s20, 0
      %s255 = sadd.s32 %s254, %s252
      %s256 = scalar_lea.vmem %s1, %s255
      %p257 = scmp.lt.s32.totalorder %s19, 1
      %s258 = scalar_select %p257, %s19, 1
      %s259 = smul.addr %s258, 32
      %s260 = smul.addr %s259, 8
      %s261 = scalar_lea.vmem %s2, %s260
      %p262 = scmp.lt.s32.totalorder %s20, 0
      %s263 = scalar_select %p262, %s20, 0
      %s264 = smul.addr %s263, 4
      %s265 = scalar_lea.vmem %s3, %s264
      %p266 = scmp.lt.s32.totalorder %s19, 1
      %s267 = scalar_select %p266, %s19, 1
      %p268 = scmp.lt.s32.totalorder %s20, 0
      %s269 = scalar_select %p268, %s20, 0
      %s270 = smul.addr %s267, 32
      %s271 = sadd.s32 %s269, %s270
      %s272 = smul.addr %s271, 8
      %s273 = scalar_lea.vmem %s4, %s272
      %p275 = scmp.eq.s32.totalorder %s20, 0
      // Predicated region
      $region37: #{tpu_custom_call.1} parent=35 // pred_check
        %p276 = pneg %p275
      $region38: #{tpu_custom_call.1} parent=35 // pred_check_branch
        %278 = sbr.rel (%p276) target = $region40
      $region39: #{tpu_custom_call.1} parent=35 // pred_region
        %v279 = vld [vmem:[%s261] sm:$0xff]
        %v280 = vld [vmem:[%s261 + $0x8] sm:$0xff]
        %v281 = vld [vmem:[%s261 + $0x10] sm:$0xff]
        %v282 = vld [vmem:[%s261 + $0x18] sm:$0xff]
        %v283 = vld [vmem:[%s261 + $0x20] sm:$0xff]
        %v284 = vld [vmem:[%s261 + $0x28] sm:$0xff]
        %v285 = vld [vmem:[%s261 + $0x30] sm:$0xff]
        %v286 = vld [vmem:[%s261 + $0x38] sm:$0xff]
        %v287 = vld [vmem:[%s261 + $0x40] sm:$0xff]
        %v288 = vld [vmem:[%s261 + $0x48] sm:$0xff]
        %v289 = vld [vmem:[%s261 + $0x50] sm:$0xff]
        %v290 = vld [vmem:[%s261 + $0x58] sm:$0xff]
        %v291 = vld [vmem:[%s261 + $0x60] sm:$0xff]
        %v292 = vld [vmem:[%s261 + $0x68] sm:$0xff]
        %v293 = vld [vmem:[%s261 + $0x70] sm:$0xff]
        %v294 = vld [vmem:[%s261 + $0x78] sm:$0xff]
        %v295 = vld [vmem:[%s261 + $0x80] sm:$0xff]
        %v296 = vld [vmem:[%s261 + $0x88] sm:$0xff]
        %v297 = vld [vmem:[%s261 + $0x90] sm:$0xff]
        %v298 = vld [vmem:[%s261 + $0x98] sm:$0xff]
        %v299 = vld [vmem:[%s261 + $0xa0] sm:$0xff]
        %v300 = vld [vmem:[%s261 + $0xa8] sm:$0xff]
        %v301 = vld [vmem:[%s261 + $0xb0] sm:$0xff]
        %v302 = vld [vmem:[%s261 + $0xb8] sm:$0xff]
        %v303 = vld [vmem:[%s261 + $0xc0] sm:$0xff]
        %v304 = vld [vmem:[%s261 + $0xc8] sm:$0xff]
        %v305 = vld [vmem:[%s261 + $0xd0] sm:$0xff]
        %v306 = vld [vmem:[%s261 + $0xd8] sm:$0xff]
        %v307 = vld [vmem:[%s261 + $0xe0] sm:$0xff]
        %v308 = vld [vmem:[%s261 + $0xe8] sm:$0xff]
        %v309 = vld [vmem:[%s261 + $0xf0] sm:$0xff]
        %v310 = vld [vmem:[%s261 + $0xf8] sm:$0xff]
        %v311 = vld [vmem:[%s250] sm:$0x1]
        %v313 = vlaneseq
        %v314 = vshrl.u32 %v313, 7
        %v315 = vsub.s32 0, %v314
        %v316 = vrot.slane %v311, %v315
        %v318 = vmul.f32 %v279, %v316
        %v319 = vmul.f32 %v280, %v316
        %v320 = vmul.f32 %v281, %v316
        %v321 = vmul.f32 %v282, %v316
        %v322 = vmul.f32 %v283, %v316
        %v323 = vmul.f32 %v284, %v316
        %v324 = vmul.f32 %v285, %v316
        %v325 = vmul.f32 %v286, %v316
        %v326 = vmul.f32 %v287, %v316
        %v327 = vmul.f32 %v288, %v316
        %v328 = vmul.f32 %v289, %v316
        %v329 = vmul.f32 %v290, %v316
        %v330 = vmul.f32 %v291, %v316
        %v331 = vmul.f32 %v292, %v316
        %v332 = vmul.f32 %v293, %v316
        %v333 = vmul.f32 %v294, %v316
        %v334 = vmul.f32 %v295, %v316
        %v335 = vmul.f32 %v296, %v316
        %v336 = vmul.f32 %v297, %v316
        %v337 = vmul.f32 %v298, %v316
        %v338 = vmul.f32 %v299, %v316
        %v339 = vmul.f32 %v300, %v316
        %v340 = vmul.f32 %v301, %v316
        %v341 = vmul.f32 %v302, %v316
        %v342 = vmul.f32 %v303, %v316
        %v343 = vmul.f32 %v304, %v316
        %v344 = vmul.f32 %v305, %v316
        %v345 = vmul.f32 %v306, %v316
        %v346 = vmul.f32 %v307, %v316
        %v347 = vmul.f32 %v308, %v316
        %v348 = vmul.f32 %v309, %v316
        %v349 = vmul.f32 %v310, %v316
        %vm350 = vcmask 97280
        %351 = vst.msk [vmem:[#allocation2] sm:$0xff] %vm350, 0.0
        %352 = vst.msk [vmem:[#allocation2 + $0x8] sm:$0xff] %vm350, 0.0
        %s353 = scalar_lea.vmem [#allocation2], 272
        %354 = vst.msk [vmem:[%s353] sm:$0xff] %vm350, 0.0
        %355 = vst.msk [vmem:[%s353 + $0x8] sm:$0xff] %vm350, 0.0
        %s356 = scalar_lea.vmem [#allocation2], 16
        %vm357 = vcmask 24576
        %358 = vst.msk [vmem:[%s356] sm:$0x1] %vm357, 0.0
        %359 = vst.msk [vmem:[%s356 + $0x10] sm:$0x1] %vm357, 0.0
        %360 = vst.msk [vmem:[%s356 + $0x20] sm:$0x1] %vm357, 0.0
        %361 = vst.msk [vmem:[%s356 + $0x30] sm:$0x1] %vm357, 0.0
        %362 = vst.msk [vmem:[%s356 + $0x40] sm:$0x1] %vm357, 0.0
        %363 = vst.msk [vmem:[%s356 + $0x50] sm:$0x1] %vm357, 0.0
        %364 = vst.msk [vmem:[%s356 + $0x60] sm:$0x1] %vm357, 0.0
        %365 = vst.msk [vmem:[%s356 + $0x70] sm:$0x1] %vm357, 0.0
        %366 = vst.msk [vmem:[%s356 + $0x80] sm:$0x1] %vm357, 0.0
        %367 = vst.msk [vmem:[%s356 + $0x90] sm:$0x1] %vm357, 0.0
        %368 = vst.msk [vmem:[%s356 + $0xa0] sm:$0x1] %vm357, 0.0
        %369 = vst.msk [vmem:[%s356 + $0xb0] sm:$0x1] %vm357, 0.0
        %370 = vst.msk [vmem:[%s356 + $0xc0] sm:$0x1] %vm357, 0.0
        %371 = vst.msk [vmem:[%s356 + $0xd0] sm:$0x1] %vm357, 0.0
        %372 = vst.msk [vmem:[%s356 + $0xe0] sm:$0x1] %vm357, 0.0
        %373 = vst.msk [vmem:[%s356 + $0xf0] sm:$0x1] %vm357, 0.0
        %vm374 = vcmask 31744
        %375 = vst.msk [vmem:[%s356 + $0x1] sm:$0xff] %vm374, %v318
        %vm376 = vcmask 30720
        %377 = vst.msk [vmem:[%s356 + $0x9] sm:$0x7f] %vm376, %v319
        %378 = vst.msk [vmem:[%s356 + $0x11] sm:$0xff] %vm374, %v320
        %379 = vst.msk [vmem:[%s356 + $0x19] sm:$0x7f] %vm376, %v321
        %380 = vst.msk [vmem:[%s356 + $0x21] sm:$0xff] %vm374, %v322
        %381 = vst.msk [vmem:[%s356 + $0x29] sm:$0x7f] %vm376, %v323
        %382 = vst.msk [vmem:[%s356 + $0x31] sm:$0xff] %vm374, %v324
        %383 = vst.msk [vmem:[%s356 + $0x39] sm:$0x7f] %vm376, %v325
        %384 = vst.msk [vmem:[%s356 + $0x41] sm:$0xff] %vm374, %v326
        %385 = vst.msk [vmem:[%s356 + $0x49] sm:$0x7f] %vm376, %v327
        %386 = vst.msk [vmem:[%s356 + $0x51] sm:$0xff] %vm374, %v328
        %387 = vst.msk [vmem:[%s356 + $0x59] sm:$0x7f] %vm376, %v329
        %388 = vst.msk [vmem:[%s356 + $0x61] sm:$0xff] %vm374, %v330
        %389 = vst.msk [vmem:[%s356 + $0x69] sm:$0x7f] %vm376, %v331
        %390 = vst.msk [vmem:[%s356 + $0x71] sm:$0xff] %vm374, %v332
        %391 = vst.msk [vmem:[%s356 + $0x79] sm:$0x7f] %vm376, %v333
        %392 = vst.msk [vmem:[%s356 + $0x81] sm:$0xff] %vm374, %v334
        %393 = vst.msk [vmem:[%s356 + $0x89] sm:$0x7f] %vm376, %v335
        %394 = vst.msk [vmem:[%s356 + $0x91] sm:$0xff] %vm374, %v336
        %395 = vst.msk [vmem:[%s356 + $0x99] sm:$0x7f] %vm376, %v337
        %396 = vst.msk [vmem:[%s356 + $0xa1] sm:$0xff] %vm374, %v338
        %397 = vst.msk [vmem:[%s356 + $0xa9] sm:$0x7f] %vm376, %v339
        %398 = vst.msk [vmem:[%s356 + $0xb1] sm:$0xff] %vm374, %v340
        %399 = vst.msk [vmem:[%s356 + $0xb9] sm:$0x7f] %vm376, %v341
        %400 = vst.msk [vmem:[%s356 + $0xc1] sm:$0xff] %vm374, %v342
        %401 = vst.msk [vmem:[%s356 + $0xc9] sm:$0x7f] %vm376, %v343
        %402 = vst.msk [vmem:[%s356 + $0xd1] sm:$0xff] %vm374, %v344
        %403 = vst.msk [vmem:[%s356 + $0xd9] sm:$0x7f] %vm376, %v345
        %404 = vst.msk [vmem:[%s356 + $0xe1] sm:$0xff] %vm374, %v346
        %405 = vst.msk [vmem:[%s356 + $0xe9] sm:$0x7f] %vm376, %v347
        %406 = vst.msk [vmem:[%s356 + $0xf1] sm:$0xff] %vm374, %v348
        %407 = vst.msk [vmem:[%s356 + $0xf9] sm:$0x7f] %vm376, %v349
        %440 = vrot.lane.b32.xlu0 %v318, 4
        %v441 = vpop.permute.xlu0 %440
        %442 = vrot.lane.b32.xlu0 %v319, 4
        %v443 = vpop.permute.xlu0 %442
        %444 = vrot.lane.b32.xlu0 %v320, 4
        %v445 = vpop.permute.xlu0 %444
        %446 = vrot.lane.b32.xlu0 %v321, 4
        %v447 = vpop.permute.xlu0 %446
        %448 = vrot.lane.b32.xlu0 %v322, 4
        %v449 = vpop.permute.xlu0 %448
        %450 = vrot.lane.b32.xlu0 %v323, 4
        %v451 = vpop.permute.xlu0 %450
        %452 = vrot.lane.b32.xlu0 %v324, 4
        %v453 = vpop.permute.xlu0 %452
        %454 = vrot.lane.b32.xlu0 %v325, 4
        %v455 = vpop.permute.xlu0 %454
        %456 = vrot.lane.b32.xlu0 %v326, 4
        %v457 = vpop.permute.xlu0 %456
        %458 = vrot.lane.b32.xlu0 %v327, 4
        %v459 = vpop.permute.xlu0 %458
        %460 = vrot.lane.b32.xlu0 %v328, 4
        %v461 = vpop.permute.xlu0 %460
        %462 = vrot.lane.b32.xlu0 %v329, 4
        %v463 = vpop.permute.xlu0 %462
        %464 = vrot.lane.b32.xlu0 %v330, 4
        %v465 = vpop.permute.xlu0 %464
        %466 = vrot.lane.b32.xlu0 %v331, 4
        %v467 = vpop.permute.xlu0 %466
        %468 = vrot.lane.b32.xlu0 %v332, 4
        %v469 = vpop.permute.xlu0 %468
        %470 = vrot.lane.b32.xlu0 %v333, 4
        %v471 = vpop.permute.xlu0 %470
        %472 = vrot.lane.b32.xlu0 %v334, 4
        %v473 = vpop.permute.xlu0 %472
        %474 = vrot.lane.b32.xlu0 %v335, 4
        %v475 = vpop.permute.xlu0 %474
        %476 = vrot.lane.b32.xlu0 %v336, 4
        %v477 = vpop.permute.xlu0 %476
        %478 = vrot.lane.b32.xlu0 %v337, 4
        %v479 = vpop.permute.xlu0 %478
        %480 = vrot.lane.b32.xlu0 %v338, 4
        %v481 = vpop.permute.xlu0 %480
        %482 = vrot.lane.b32.xlu0 %v339, 4
        %v483 = vpop.permute.xlu0 %482
        %484 = vrot.lane.b32.xlu0 %v340, 4
        %v485 = vpop.permute.xlu0 %484
        %486 = vrot.lane.b32.xlu0 %v341, 4
        %v487 = vpop.permute.xlu0 %486
        %488 = vrot.lane.b32.xlu0 %v342, 4
        %v489 = vpop.permute.xlu0 %488
        %490 = vrot.lane.b32.xlu0 %v343, 4
        %v491 = vpop.permute.xlu0 %490
        %492 = vrot.lane.b32.xlu0 %v344, 4
        %v493 = vpop.permute.xlu0 %492
        %494 = vrot.lane.b32.xlu0 %v345, 4
        %v495 = vpop.permute.xlu0 %494
        %496 = vrot.lane.b32.xlu0 %v346, 4
        %v497 = vpop.permute.xlu0 %496
        %498 = vrot.lane.b32.xlu0 %v347, 4
        %v499 = vpop.permute.xlu0 %498
        %500 = vrot.lane.b32.xlu0 %v348, 4
        %v501 = vpop.permute.xlu0 %500
        %502 = vrot.lane.b32.xlu0 %v349, 4
        %v503 = vpop.permute.xlu0 %502
        %vm536 = vcmask 64544
        %537 = vst.msk [vmem:[%s356] sm:$0xff] %vm536, %v441
        %538 = vst.msk [vmem:[%s356 + $0x8] sm:$0xff] %vm536, %v443
        %539 = vst.msk [vmem:[%s356 + $0x10] sm:$0xff] %vm536, %v445
        %540 = vst.msk [vmem:[%s356 + $0x18] sm:$0xff] %vm536, %v447
        %541 = vst.msk [vmem:[%s356 + $0x20] sm:$0xff] %vm536, %v449
        %542 = vst.msk [vmem:[%s356 + $0x28] sm:$0xff] %vm536, %v451
        %543 = vst.msk [vmem:[%s356 + $0x30] sm:$0xff] %vm536, %v453
        %544 = vst.msk [vmem:[%s356 + $0x38] sm:$0xff] %vm536, %v455
        %545 = vst.msk [vmem:[%s356 + $0x40] sm:$0xff] %vm536, %v457
        %546 = vst.msk [vmem:[%s356 + $0x48] sm:$0xff] %vm536, %v459
        %547 = vst.msk [vmem:[%s356 + $0x50] sm:$0xff] %vm536, %v461
        %548 = vst.msk [vmem:[%s356 + $0x58] sm:$0xff] %vm536, %v463
        %549 = vst.msk [vmem:[%s356 + $0x60] sm:$0xff] %vm536, %v465
        %550 = vst.msk [vmem:[%s356 + $0x68] sm:$0xff] %vm536, %v467
        %551 = vst.msk [vmem:[%s356 + $0x70] sm:$0xff] %vm536, %v469
        %552 = vst.msk [vmem:[%s356 + $0x78] sm:$0xff] %vm536, %v471
        %553 = vst.msk [vmem:[%s356 + $0x80] sm:$0xff] %vm536, %v473
        %554 = vst.msk [vmem:[%s356 + $0x88] sm:$0xff] %vm536, %v475
        %555 = vst.msk [vmem:[%s356 + $0x90] sm:$0xff] %vm536, %v477
        %556 = vst.msk [vmem:[%s356 + $0x98] sm:$0xff] %vm536, %v479
        %557 = vst.msk [vmem:[%s356 + $0xa0] sm:$0xff] %vm536, %v481
        %558 = vst.msk [vmem:[%s356 + $0xa8] sm:$0xff] %vm536, %v483
        %559 = vst.msk [vmem:[%s356 + $0xb0] sm:$0xff] %vm536, %v485
        %560 = vst.msk [vmem:[%s356 + $0xb8] sm:$0xff] %vm536, %v487
        %561 = vst.msk [vmem:[%s356 + $0xc0] sm:$0xff] %vm536, %v489
        %562 = vst.msk [vmem:[%s356 + $0xc8] sm:$0xff] %vm536, %v491
        %563 = vst.msk [vmem:[%s356 + $0xd0] sm:$0xff] %vm536, %v493
        %564 = vst.msk [vmem:[%s356 + $0xd8] sm:$0xff] %vm536, %v495
        %565 = vst.msk [vmem:[%s356 + $0xe0] sm:$0xff] %vm536, %v497
        %566 = vst.msk [vmem:[%s356 + $0xe8] sm:$0xff] %vm536, %v499
        %567 = vst.msk [vmem:[%s356 + $0xf0] sm:$0xff] %vm536, %v501
        %568 = vst.msk [vmem:[%s356 + $0xf8] sm:$0xff] %vm536, %v503
        %vm569 = vcmask 90176
        %570 = vst.msk [vmem:[%s356 + $0xf] sm:$0x1] %vm569, 0.0
        %571 = vst.msk [vmem:[%s356 + $0x1f] sm:$0x1] %vm569, 0.0
        %572 = vst.msk [vmem:[%s356 + $0x2f] sm:$0x1] %vm569, 0.0
        %573 = vst.msk [vmem:[%s356 + $0x3f] sm:$0x1] %vm569, 0.0
        %574 = vst.msk [vmem:[%s356 + $0x4f] sm:$0x1] %vm569, 0.0
        %575 = vst.msk [vmem:[%s356 + $0x5f] sm:$0x1] %vm569, 0.0
        %576 = vst.msk [vmem:[%s356 + $0x6f] sm:$0x1] %vm569, 0.0
        %577 = vst.msk [vmem:[%s356 + $0x7f] sm:$0x1] %vm569, 0.0
        %578 = vst.msk [vmem:[%s356 + $0x8f] sm:$0x1] %vm569, 0.0
        %579 = vst.msk [vmem:[%s356 + $0x9f] sm:$0x1] %vm569, 0.0
        %580 = vst.msk [vmem:[%s356 + $0xaf] sm:$0x1] %vm569, 0.0
        %581 = vst.msk [vmem:[%s356 + $0xbf] sm:$0x1] %vm569, 0.0
        %582 = vst.msk [vmem:[%s356 + $0xcf] sm:$0x1] %vm569, 0.0
        %583 = vst.msk [vmem:[%s356 + $0xdf] sm:$0x1] %vm569, 0.0
        %584 = vst.msk [vmem:[%s356 + $0xef] sm:$0x1] %vm569, 0.0
        %585 = vst.msk [vmem:[%s356 + $0xff] sm:$0x1] %vm569, 0.0
        %586 = vrot.lane.b32.xlu0 %v318, 8
        %v587 = vpop.permute.xlu0 %586
        %588 = vrot.lane.b32.xlu0 %v319, 8
        %v589 = vpop.permute.xlu0 %588
        %590 = vrot.lane.b32.xlu0 %v320, 8
        %v591 = vpop.permute.xlu0 %590
        %592 = vrot.lane.b32.xlu0 %v321, 8
        %v593 = vpop.permute.xlu0 %592
        %594 = vrot.lane.b32.xlu0 %v322, 8
        %v595 = vpop.permute.xlu0 %594
        %596 = vrot.lane.b32.xlu0 %v323, 8
        %v597 = vpop.permute.xlu0 %596
        %598 = vrot.lane.b32.xlu0 %v324, 8
        %v599 = vpop.permute.xlu0 %598
        %600 = vrot.lane.b32.xlu0 %v325, 8
        %v601 = vpop.permute.xlu0 %600
        %602 = vrot.lane.b32.xlu0 %v326, 8
        %v603 = vpop.permute.xlu0 %602
        %604 = vrot.lane.b32.xlu0 %v327, 8
        %v605 = vpop.permute.xlu0 %604
        %606 = vrot.lane.b32.xlu0 %v328, 8
        %v607 = vpop.permute.xlu0 %606
        %608 = vrot.lane.b32.xlu0 %v329, 8
        %v609 = vpop.permute.xlu0 %608
        %610 = vrot.lane.b32.xlu0 %v330, 8
        %v611 = vpop.permute.xlu0 %610
        %612 = vrot.lane.b32.xlu0 %v331, 8
        %v613 = vpop.permute.xlu0 %612
        %614 = vrot.lane.b32.xlu0 %v332, 8
        %v615 = vpop.permute.xlu0 %614
        %616 = vrot.lane.b32.xlu0 %v333, 8
        %v617 = vpop.permute.xlu0 %616
        %618 = vrot.lane.b32.xlu0 %v334, 8
        %v619 = vpop.permute.xlu0 %618
        %620 = vrot.lane.b32.xlu0 %v335, 8
        %v621 = vpop.permute.xlu0 %620
        %622 = vrot.lane.b32.xlu0 %v336, 8
        %v623 = vpop.permute.xlu0 %622
        %624 = vrot.lane.b32.xlu0 %v337, 8
        %v625 = vpop.permute.xlu0 %624
        %626 = vrot.lane.b32.xlu0 %v338, 8
        %v627 = vpop.permute.xlu0 %626
        %628 = vrot.lane.b32.xlu0 %v339, 8
        %v629 = vpop.permute.xlu0 %628
        %630 = vrot.lane.b32.xlu0 %v340, 8
        %v631 = vpop.permute.xlu0 %630
        %632 = vrot.lane.b32.xlu0 %v341, 8
        %v633 = vpop.permute.xlu0 %632
        %634 = vrot.lane.b32.xlu0 %v342, 8
        %v635 = vpop.permute.xlu0 %634
        %636 = vrot.lane.b32.xlu0 %v343, 8
        %v637 = vpop.permute.xlu0 %636
        %638 = vrot.lane.b32.xlu0 %v344, 8
        %v639 = vpop.permute.xlu0 %638
        %640 = vrot.lane.b32.xlu0 %v345, 8
        %v641 = vpop.permute.xlu0 %640
        %642 = vrot.lane.b32.xlu0 %v346, 8
        %v643 = vpop.permute.xlu0 %642
        %644 = vrot.lane.b32.xlu0 %v347, 8
        %v645 = vpop.permute.xlu0 %644
        %646 = vrot.lane.b32.xlu0 %v348, 8
        %v647 = vpop.permute.xlu0 %646
        %648 = vrot.lane.b32.xlu0 %v349, 8
        %v649 = vpop.permute.xlu0 %648
        %vm682 = vcmask 97345
        %683 = vst.msk [vmem:[%s356 - $0x1] sm:$0xfe] %vm682, %v587
        %vm684 = vcmask 97344
        %685 = vst.msk [vmem:[%s356 + $0x7] sm:$0xff] %vm684, %v589
        %686 = vst.msk [vmem:[%s356 + $0xf] sm:$0xfe] %vm682, %v591
        %687 = vst.msk [vmem:[%s356 + $0x17] sm:$0xff] %vm684, %v593
        %688 = vst.msk [vmem:[%s356 + $0x1f] sm:$0xfe] %vm682, %v595
        %689 = vst.msk [vmem:[%s356 + $0x27] sm:$0xff] %vm684, %v597
        %690 = vst.msk [vmem:[%s356 + $0x2f] sm:$0xfe] %vm682, %v599
        %691 = vst.msk [vmem:[%s356 + $0x37] sm:$0xff] %vm684, %v601
        %692 = vst.msk [vmem:[%s356 + $0x3f] sm:$0xfe] %vm682, %v603
        %693 = vst.msk [vmem:[%s356 + $0x47] sm:$0xff] %vm684, %v605
        %694 = vst.msk [vmem:[%s356 + $0x4f] sm:$0xfe] %vm682, %v607
        %695 = vst.msk [vmem:[%s356 + $0x57] sm:$0xff] %vm684, %v609
        %696 = vst.msk [vmem:[%s356 + $0x5f] sm:$0xfe] %vm682, %v611
        %697 = vst.msk [vmem:[%s356 + $0x67] sm:$0xff] %vm684, %v613
        %698 = vst.msk [vmem:[%s356 + $0x6f] sm:$0xfe] %vm682, %v615
        %699 = vst.msk [vmem:[%s356 + $0x77] sm:$0xff] %vm684, %v617
        %700 = vst.msk [vmem:[%s356 + $0x7f] sm:$0xfe] %vm682, %v619
        %701 = vst.msk [vmem:[%s356 + $0x87] sm:$0xff] %vm684, %v621
        %702 = vst.msk [vmem:[%s356 + $0x8f] sm:$0xfe] %vm682, %v623
        %703 = vst.msk [vmem:[%s356 + $0x97] sm:$0xff] %vm684, %v625
        %704 = vst.msk [vmem:[%s356 + $0x9f] sm:$0xfe] %vm682, %v627
        %705 = vst.msk [vmem:[%s356 + $0xa7] sm:$0xff] %vm684, %v629
        %706 = vst.msk [vmem:[%s356 + $0xaf] sm:$0xfe] %vm682, %v631
        %707 = vst.msk [vmem:[%s356 + $0xb7] sm:$0xff] %vm684, %v633
        %708 = vst.msk [vmem:[%s356 + $0xbf] sm:$0xfe] %vm682, %v635
        %709 = vst.msk [vmem:[%s356 + $0xc7] sm:$0xff] %vm684, %v637
        %710 = vst.msk [vmem:[%s356 + $0xcf] sm:$0xfe] %vm682, %v639
        %711 = vst.msk [vmem:[%s356 + $0xd7] sm:$0xff] %vm684, %v641
        %712 = vst.msk [vmem:[%s356 + $0xdf] sm:$0xfe] %vm682, %v643
        %713 = vst.msk [vmem:[%s356 + $0xe7] sm:$0xff] %vm684, %v645
        %714 = vst.msk [vmem:[%s356 + $0xef] sm:$0xfe] %vm682, %v647
        %715 = vst.msk [vmem:[%s356 + $0xf7] sm:$0xff] %vm684, %v649
      $region40: #{tpu_custom_call.1} parent=35 // pred_fallthru
        _
      %v716 = vld [vmem:[#allocation2] sm:$0xff]
      %v717 = vld [vmem:[#allocation2 + $0x8] sm:$0xff]
      %v718 = vld [vmem:[#allocation2 + $0x10] sm:$0xff]
      %v719 = vld [vmem:[#allocation2 + $0x18] sm:$0xff]
      %v720 = vld [vmem:[#allocation2 + $0x20] sm:$0xff]
      %v721 = vld [vmem:[#allocation2 + $0x28] sm:$0xff]
      %v722 = vld [vmem:[#allocation2 + $0x30] sm:$0xff]
      %v723 = vld [vmem:[#allocation2 + $0x38] sm:$0xff]
      %v724 = vld [vmem:[#allocation2 + $0x40] sm:$0xff]
      %v725 = vld [vmem:[#allocation2 + $0x48] sm:$0xff]
      %v726 = vld [vmem:[#allocation2 + $0x50] sm:$0xff]
      %v727 = vld [vmem:[#allocation2 + $0x58] sm:$0xff]
      %v728 = vld [vmem:[#allocation2 + $0x60] sm:$0xff]
      %v729 = vld [vmem:[#allocation2 + $0x68] sm:$0xff]
      %v730 = vld [vmem:[#allocation2 + $0x70] sm:$0xff]
      %v731 = vld [vmem:[#allocation2 + $0x78] sm:$0xff]
      %v732 = vld [vmem:[#allocation2 + $0x80] sm:$0xff]
      %v733 = vld [vmem:[#allocation2 + $0x88] sm:$0xff]
      %v734 = vld [vmem:[#allocation2 + $0x90] sm:$0xff]
      %v735 = vld [vmem:[#allocation2 + $0x98] sm:$0xff]
      %v736 = vld [vmem:[#allocation2 + $0xa0] sm:$0xff]
      %v737 = vld [vmem:[#allocation2 + $0xa8] sm:$0xff]
      %v738 = vld [vmem:[#allocation2 + $0xb0] sm:$0xff]
      %v739 = vld [vmem:[#allocation2 + $0xb8] sm:$0xff]
      %v740 = vld [vmem:[#allocation2 + $0xc0] sm:$0xff]
      %v741 = vld [vmem:[#allocation2 + $0xc8] sm:$0xff]
      %v742 = vld [vmem:[#allocation2 + $0xd0] sm:$0xff]
      %v743 = vld [vmem:[#allocation2 + $0xd8] sm:$0xff]
      %v744 = vld [vmem:[#allocation2 + $0xe0] sm:$0xff]
      %v745 = vld [vmem:[#allocation2 + $0xe8] sm:$0xff]
      %v746 = vld [vmem:[#allocation2 + $0xf0] sm:$0xff]
      %v747 = vld [vmem:[#allocation2 + $0xf8] sm:$0xff]
      %v748 = vpack.c.bf16 %v717, %v716
      %v749 = vpack.c.bf16 %v719, %v718
      %v750 = vpack.c.bf16 %v721, %v720
      %v751 = vpack.c.bf16 %v723, %v722
      %v752 = vpack.c.bf16 %v725, %v724
      %v753 = vpack.c.bf16 %v727, %v726
      %v754 = vpack.c.bf16 %v729, %v728
      %v755 = vpack.c.bf16 %v731, %v730
      %v756 = vpack.c.bf16 %v733, %v732
      %v757 = vpack.c.bf16 %v735, %v734
      %v758 = vpack.c.bf16 %v737, %v736
      %v759 = vpack.c.bf16 %v739, %v738
      %v760 = vpack.c.bf16 %v741, %v740
      %v761 = vpack.c.bf16 %v743, %v742
      %v762 = vpack.c.bf16 %v745, %v744
      %v763 = vpack.c.bf16 %v747, %v746
      %v764 = vld [vmem:[%s265] sm:$0xf]
      %v765 = vld [vmem:[%s265 + $0x4] sm:$0x3]
      %s766 = scalar_lea.vmem [#allocation2], 16
      %v767 = vld [vmem:[%s766] sm:$0xff]
      %v768 = vld [vmem:[%s766 + $0x8] sm:$0xff]
      %v769 = vld [vmem:[%s766 + $0x10] sm:$0xff]
      %v770 = vld [vmem:[%s766 + $0x18] sm:$0xff]
      %v771 = vld [vmem:[%s766 + $0x20] sm:$0xff]
      %v772 = vld [vmem:[%s766 + $0x28] sm:$0xff]
      %v773 = vld [vmem:[%s766 + $0x30] sm:$0xff]
      %v774 = vld [vmem:[%s766 + $0x38] sm:$0xff]
      %v775 = vld [vmem:[%s766 + $0x40] sm:$0xff]
      %v776 = vld [vmem:[%s766 + $0x48] sm:$0xff]
      %v777 = vld [vmem:[%s766 + $0x50] sm:$0xff]
      %v778 = vld [vmem:[%s766 + $0x58] sm:$0xff]
      %v779 = vld [vmem:[%s766 + $0x60] sm:$0xff]
      %v780 = vld [vmem:[%s766 + $0x68] sm:$0xff]
      %v781 = vld [vmem:[%s766 + $0x70] sm:$0xff]
      %v782 = vld [vmem:[%s766 + $0x78] sm:$0xff]
      %v783 = vld [vmem:[%s766 + $0x80] sm:$0xff]
      %v784 = vld [vmem:[%s766 + $0x88] sm:$0xff]
      %v785 = vld [vmem:[%s766 + $0x90] sm:$0xff]
      %v786 = vld [vmem:[%s766 + $0x98] sm:$0xff]
      %v787 = vld [vmem:[%s766 + $0xa0] sm:$0xff]
      %v788 = vld [vmem:[%s766 + $0xa8] sm:$0xff]
      %v789 = vld [vmem:[%s766 + $0xb0] sm:$0xff]
      %v790 = vld [vmem:[%s766 + $0xb8] sm:$0xff]
      %v791 = vld [vmem:[%s766 + $0xc0] sm:$0xff]
      %v792 = vld [vmem:[%s766 + $0xc8] sm:$0xff]
      %v793 = vld [vmem:[%s766 + $0xd0] sm:$0xff]
      %v794 = vld [vmem:[%s766 + $0xd8] sm:$0xff]
      %v795 = vld [vmem:[%s766 + $0xe0] sm:$0xff]
      %v796 = vld [vmem:[%s766 + $0xe8] sm:$0xff]
      %v797 = vld [vmem:[%s766 + $0xf0] sm:$0xff]
      %v798 = vld [vmem:[%s766 + $0xf8] sm:$0xff]
      %v799 = vpack.c.bf16 %v768, %v767
      %v800 = vpack.c.bf16 %v770, %v769
      %v801 = vpack.c.bf16 %v772, %v771
      %v802 = vpack.c.bf16 %v774, %v773
      %v803 = vpack.c.bf16 %v776, %v775
      %v804 = vpack.c.bf16 %v778, %v777
      %v805 = vpack.c.bf16 %v780, %v779
      %v806 = vpack.c.bf16 %v782, %v781
      %v807 = vpack.c.bf16 %v784, %v783
      %v808 = vpack.c.bf16 %v786, %v785
      %v809 = vpack.c.bf16 %v788, %v787
      %v810 = vpack.c.bf16 %v790, %v789
      %v811 = vpack.c.bf16 %v792, %v791
      %v812 = vpack.c.bf16 %v794, %v793
      %v813 = vpack.c.bf16 %v796, %v795
      %v814 = vpack.c.bf16 %v798, %v797
      %s815 = scalar_lea.vmem %s265, 8
      %v816 = vld [vmem:[%s815] sm:$0xf]
      %v817 = vld [vmem:[%s815 + $0x4] sm:$0x3]
      %v820 = vunpack.c.l.b16 %v816
      %v821 = vunpack.c.l.b16 %v817
      %v822 = vpack.c.b16 %v821, %v820
      %vm823 = vcmask 97280
      %v825 = vsel %vm823, %v799, 0
      %v828 = vsel %vm823, %v800, 0
      %v831 = vsel %vm823, %v801, 0
      %v834 = vsel %vm823, %v802, 0
      %v837 = vsel %vm823, %v803, 0
      %v840 = vsel %vm823, %v804, 0
      %v843 = vsel %vm823, %v805, 0
      %v846 = vsel %vm823, %v806, 0
      %v849 = vsel %vm823, %v807, 0
      %v852 = vsel %vm823, %v808, 0
      %v855 = vsel %vm823, %v809, 0
      %v858 = vsel %vm823, %v810, 0
      %v861 = vsel %vm823, %v811, 0
      %v864 = vsel %vm823, %v812, 0
      %v867 = vsel %vm823, %v813, 0
      %v870 = vsel %vm823, %v814, 0
      %vm872 = vcmask 1045504
      %v874 = vsel %vm872, %v822, 0
      %876 = vmatprep.subr.bf16.mxu0 0
      %877 = vmatpush1.bf16.msra.mxu0 %v874
      %878 = vmatprep.subr.bf16.mxu0 0
      %879 = vmatpush1.bf16.msra.mxu0 0
      %880 = vmatprep.subr.bf16.mxu0 0
      %881 = vmatpush1.bf16.msra.mxu0 0
      %882 = vmatprep.subr.bf16.mxu0 0
      %883 = vmatpush1.bf16.msra.mxu0 0
      %884 = vmatprep.subr.bf16.mxu0 0
      %885 = vmatpush1.bf16.msra.mxu0 0
      %886 = vmatprep.subr.bf16.mxu0 0
      %887 = vmatpush1.bf16.msra.mxu0 0
      %888 = vmatprep.subr.bf16.mxu0 0
      %889 = vmatpush1.bf16.msra.mxu0 0
      %890 = vmatprep.subr.bf16.mxu0 0
      %891 = vmatpush1.bf16.msra.mxu0 0
      %892 = vmatprep.subr.bf16.mxu0 0
      %893 = vmatpush1.bf16.msra.mxu0 0
      %894 = vmatprep.subr.bf16.mxu0 0
      %895 = vmatpush1.bf16.msra.mxu0 0
      %896 = vmatprep.subr.bf16.mxu0 0
      %897 = vmatpush1.bf16.msra.mxu0 0
      %898 = vmatprep.subr.bf16.mxu0 0
      %899 = vmatpush1.bf16.msra.mxu0 0
      %900 = vmatprep.subr.bf16.mxu0 0
      %901 = vmatpush1.bf16.msra.mxu0 0
      %902 = vmatprep.subr.bf16.mxu0 0
      %903 = vmatpush1.bf16.msra.mxu0 0
      %904 = vmatprep.subr.bf16.mxu0 0
      %905 = vmatpush1.bf16.msra.mxu0 0
      %906 = vmatprep.subr.bf16.mxu0 0
      %907 = vmatpush1.bf16.msra.mxu0 0
      %908 = vmatprep.mubr.bf16.mxu0 0
      %909 = vmatmul.mubr.bf16.gmra.mrb[0].mxu0 %v825
      %v910 = vpop.f32.mrb[0].mxu0
      %v911 = vadd.f32 0.0, %v910
      %v912 = vpop.f32.mrb[0].mxu0
      %v913 = vpop.f32.mrb[0].mxu0
      %v914 = vadd.f32 0.0, %v913
      %v915 = vpop.f32.mrb[0].mxu0
      %916 = vmatprep.mubr.bf16.mxu0 0
      %917 = vmatmul.mubr.bf16.gmra.mrb[0].mxu0 %v828
      %v918 = vpop.f32.mrb[0].mxu0
      %v919 = vadd.f32 0.0, %v918
      %v920 = vpop.f32.mrb[0].mxu0
      %v921 = vpop.f32.mrb[0].mxu0
      %v922 = vadd.f32 0.0, %v921
      %v923 = vpop.f32.mrb[0].mxu0
      %924 = vmatprep.mubr.bf16.mxu0 0
      %925 = vmatmul.mubr.bf16.gmra.mrb[0].mxu0 %v831
      %v926 = vpop.f32.mrb[0].mxu0
      %v927 = vadd.f32 0.0, %v926
      %v928 = vpop.f32.mrb[0].mxu0
      %v929 = vpop.f32.mrb[0].mxu0
      %v930 = vadd.f32 0.0, %v929
      %v931 = vpop.f32.mrb[0].mxu0
      %932 = vmatprep.mubr.bf16.mxu0 0
      %933 = vmatmul.mubr.bf16.gmra.mrb[0].mxu0 %v834
      %v934 = vpop.f32.mrb[0].mxu0
      %v935 = vadd.f32 0.0, %v934
      %v936 = vpop.f32.mrb[0].mxu0
      %v937 = vpop.f32.mrb[0].mxu0
      %v938 = vadd.f32 0.0, %v937
      %v939 = vpop.f32.mrb[0].mxu0
      %940 = vmatprep.mubr.bf16.mxu0 0
      %941 = vmatmul.mubr.bf16.gmra.mrb[0].mxu0 %v837
      %v942 = vpop.f32.mrb[0].mxu0
      %v943 = vadd.f32 0.0, %v942
      %v944 = vpop.f32.mrb[0].mxu0
      %v945 = vpop.f32.mrb[0].mxu0
      %v946 = vadd.f32 0.0, %v945
      %v947 = vpop.f32.mrb[0].mxu0
      %948 = vmatprep.mubr.bf16.mxu0 0
      %949 = vmatmul.mubr.bf16.gmra.mrb[0].mxu0 %v840
      %v950 = vpop.f32.mrb[0].mxu0
      %v951 = vadd.f32 0.0, %v950
      %v952 = vpop.f32.mrb[0].mxu0
      %v953 = vpop.f32.mrb[0].mxu0
      %v954 = vadd.f32 0.0, %v953
      %v955 = vpop.f32.mrb[0].mxu0
      %956 = vmatprep.mubr.bf16.mxu0 0
      %957 = vmatmul.mubr.bf16.gmra.mrb[0].mxu0 %v843
      %v958 = vpop.f32.mrb[0].mxu0
      %v959 = vadd.f32 0.0, %v958
      %v960 = vpop.f32.mrb[0].mxu0
      %v961 = vpop.f32.mrb[0].mxu0
      %v962 = vadd.f32 0.0, %v961
      %v963 = vpop.f32.mrb[0].mxu0
      %964 = vmatprep.mubr.bf16.mxu0 0
      %965 = vmatmul.mubr.bf16.gmra.mrb[0].mxu0 %v846
      %v966 = vpop.f32.mrb[0].mxu0
      %v967 = vadd.f32 0.0, %v966
      %v968 = vpop.f32.mrb[0].mxu0
      %v969 = vpop.f32.mrb[0].mxu0
      %v970 = vadd.f32 0.0, %v969
      %v971 = vpop.f32.mrb[0].mxu0
      %972 = vmatprep.mubr.bf16.mxu0 0
      %973 = vmatmul.mubr.bf16.gmra.mrb[0].mxu0 %v849
      %v974 = vpop.f32.mrb[0].mxu0
      %v975 = vadd.f32 0.0, %v974
      %v976 = vpop.f32.mrb[0].mxu0
      %v977 = vpop.f32.mrb[0].mxu0
      %v978 = vadd.f32 0.0, %v977
      %v979 = vpop.f32.mrb[0].mxu0
      %980 = vmatprep.mubr.bf16.mxu0 0
      %981 = vmatmul.mubr.bf16.gmra.mrb[0].mxu0 %v852
      %v982 = vpop.f32.mrb[0].mxu0
      %v983 = vadd.f32 0.0, %v982
      %v984 = vpop.f32.mrb[0].mxu0
      %v985 = vpop.f32.mrb[0].mxu0
      %v986 = vadd.f32 0.0, %v985
      %v987 = vpop.f32.mrb[0].mxu0
      %988 = vmatprep.mubr.bf16.mxu0 0
      %989 = vmatmul.mubr.bf16.gmra.mrb[0].mxu0 %v855
      %v990 = vpop.f32.mrb[0].mxu0
      %v991 = vadd.f32 0.0, %v990
      %v992 = vpop.f32.mrb[0].mxu0
      %v993 = vpop.f32.mrb[0].mxu0
      %v994 = vadd.f32 0.0, %v993
      %v995 = vpop.f32.mrb[0].mxu0
      %996 = vmatprep.mubr.bf16.mxu0 0
      %997 = vmatmul.mubr.bf16.gmra.mrb[0].mxu0 %v858
      %v998 = vpop.f32.mrb[0].mxu0
      %v999 = vadd.f32 0.0, %v998
      %v1000 = vpop.f32.mrb[0].mxu0
      %v1001 = vpop.f32.mrb[0].mxu0
      %v1002 = vadd.f32 0.0, %v1001
      %v1003 = vpop.f32.mrb[0].mxu0
      %1004 = vmatprep.mubr.bf16.mxu0 0
      %1005 = vmatmul.mubr.bf16.gmra.mrb[0].mxu0 %v861
      %v1006 = vpop.f32.mrb[0].mxu0
      %v1007 = vadd.f32 0.0, %v1006
      %v1008 = vpop.f32.mrb[0].mxu0
      %v1009 = vpop.f32.mrb[0].mxu0
      %v1010 = vadd.f32 0.0, %v1009
      %v1011 = vpop.f32.mrb[0].mxu0
      %1012 = vmatprep.mubr.bf16.mxu0 0
      %1013 = vmatmul.mubr.bf16.gmra.mrb[0].mxu0 %v864
      %v1014 = vpop.f32.mrb[0].mxu0
      %v1015 = vadd.f32 0.0, %v1014
      %v1016 = vpop.f32.mrb[0].mxu0
      %v1017 = vpop.f32.mrb[0].mxu0
      %v1018 = vadd.f32 0.0, %v1017
      %v1019 = vpop.f32.mrb[0].mxu0
      %1020 = vmatprep.mubr.bf16.mxu0 0
      %1021 = vmatmul.mubr.bf16.gmra.mrb[0].mxu0 %v867
      %v1022 = vpop.f32.mrb[0].mxu0
      %v1023 = vadd.f32 0.0, %v1022
      %v1024 = vpop.f32.mrb[0].mxu0
      %v1025 = vpop.f32.mrb[0].mxu0
      %v1026 = vadd.f32 0.0, %v1025
      %v1027 = vpop.f32.mrb[0].mxu0
      %1028 = vmatprep.mubr.bf16.mxu0 0
      %1029 = vmatmul.mubr.bf16.gmra.mrb[0].mxu0 %v870
      %v1030 = vpop.f32.mrb[0].mxu0
      %v1031 = vadd.f32 0.0, %v1030
      %v1032 = vpop.f32.mrb[0].mxu0
      %v1033 = vpop.f32.mrb[0].mxu0
      %v1034 = vadd.f32 0.0, %v1033
      %v1035 = vpop.f32.mrb[0].mxu0
      %1036 = vdwg.mxu0
      %v1039 = vunpack.c.l.b16 %v764
      %v1040 = vunpack.c.l.b16 %v765
      %v1041 = vpack.c.b16 %v1040, %v1039
      %v1043 = vsel %vm823, %v748, 0
      %v1046 = vsel %vm823, %v749, 0
      %v1049 = vsel %vm823, %v750, 0
      %v1052 = vsel %vm823, %v751, 0
      %v1055 = vsel %vm823, %v752, 0
      %v1058 = vsel %vm823, %v753, 0
      %v1061 = vsel %vm823, %v754, 0
      %v1064 = vsel %vm823, %v755, 0
      %v1067 = vsel %vm823, %v756, 0
      %v1070 = vsel %vm823, %v757, 0
      %v1073 = vsel %vm823, %v758, 0
      %v1076 = vsel %vm823, %v759, 0
      %v1079 = vsel %vm823, %v760, 0
      %v1082 = vsel %vm823, %v761, 0
      %v1085 = vsel %vm823, %v762, 0
      %v1088 = vsel %vm823, %v763, 0
      %v1091 = vsel %vm872, %v1041, 0
      %1093 = vmatprep.subr.bf16.mxu0 0
      %1094 = vmatpush1.bf16.msra.mxu0 %v1091
      %1095 = vmatprep.subr.bf16.mxu0 0
      %1096 = vmatpush1.bf16.msra.mxu0 0
      %1097 = vmatprep.subr.bf16.mxu0 0
      %1098 = vmatpush1.bf16.msra.mxu0 0
      %1099 = vmatprep.subr.bf16.mxu0 0
      %1100 = vmatpush1.bf16.msra.mxu0 0
      %1101 = vmatprep.subr.bf16.mxu0 0
      %1102 = vmatpush1.bf16.msra.mxu0 0
      %1103 = vmatprep.subr.bf16.mxu0 0
      %1104 = vmatpush1.bf16.msra.mxu0 0
      %1105 = vmatprep.subr.bf16.mxu0 0
      %1106 = vmatpush1.bf16.msra.mxu0 0
      %1107 = vmatprep.subr.bf16.mxu0 0
      %1108 = vmatpush1.bf16.msra.mxu0 0
      %1109 = vmatprep.subr.bf16.mxu0 0
      %1110 = vmatpush1.bf16.msra.mxu0 0
      %1111 = vmatprep.subr.bf16.mxu0 0
      %1112 = vmatpush1.bf16.msra.mxu0 0
      %1113 = vmatprep.subr.bf16.mxu0 0
      %1114 = vmatpush1.bf16.msra.mxu0 0
      %1115 = vmatprep.subr.bf16.mxu0 0
      %1116 = vmatpush1.bf16.msra.mxu0 0
      %1117 = vmatprep.subr.bf16.mxu0 0
      %1118 = vmatpush1.bf16.msra.mxu0 0
      %1119 = vmatprep.subr.bf16.mxu0 0
      %1120 = vmatpush1.bf16.msra.mxu0 0
      %1121 = vmatprep.subr.bf16.mxu0 0
      %1122 = vmatpush1.bf16.msra.mxu0 0
      %1123 = vmatprep.subr.bf16.mxu0 0
      %1124 = vmatpush1.bf16.msra.mxu0 0
      %1125 = vmatprep.mubr.bf16.mxu0 0
      %1126 = vmatmul.mubr.bf16.gmra.mrb[0].mxu0 %v1043
      %v1127 = vpop.f32.mrb[0].mxu0
      %v1128 = vadd.f32 %v911, %v1127
      %v1129 = vpop.f32.mrb[0].mxu0
      %v1130 = vpop.f32.mrb[0].mxu0
      %v1131 = vadd.f32 %v914, %v1130
      %v1132 = vpop.f32.mrb[0].mxu0
      %1133 = vmatprep.mubr.bf16.mxu0 0
      %1134 = vmatmul.mubr.bf16.gmra.mrb[0].mxu0 %v1046
      %v1135 = vpop.f32.mrb[0].mxu0
      %v1136 = vadd.f32 %v919, %v1135
      %v1137 = vpop.f32.mrb[0].mxu0
      %v1138 = vpop.f32.mrb[0].mxu0
      %v1139 = vadd.f32 %v922, %v1138
      %v1140 = vpop.f32.mrb[0].mxu0
      %1141 = vmatprep.mubr.bf16.mxu0 0
      %1142 = vmatmul.mubr.bf16.gmra.mrb[0].mxu0 %v1049
      %v1143 = vpop.f32.mrb[0].mxu0
      %v1144 = vadd.f32 %v927, %v1143
      %v1145 = vpop.f32.mrb[0].mxu0
      %v1146 = vpop.f32.mrb[0].mxu0
      %v1147 = vadd.f32 %v930, %v1146
      %v1148 = vpop.f32.mrb[0].mxu0
      %1149 = vmatprep.mubr.bf16.mxu0 0
      %1150 = vmatmul.mubr.bf16.gmra.mrb[0].mxu0 %v1052
      %v1151 = vpop.f32.mrb[0].mxu0
      %v1152 = vadd.f32 %v935, %v1151
      %v1153 = vpop.f32.mrb[0].mxu0
      %v1154 = vpop.f32.mrb[0].mxu0
      %v1155 = vadd.f32 %v938, %v1154
      %v1156 = vpop.f32.mrb[0].mxu0
      %1157 = vmatprep.mubr.bf16.mxu0 0
      %1158 = vmatmul.mubr.bf16.gmra.mrb[0].mxu0 %v1055
      %v1159 = vpop.f32.mrb[0].mxu0
      %v1160 = vadd.f32 %v943, %v1159
      %v1161 = vpop.f32.mrb[0].mxu0
      %v1162 = vpop.f32.mrb[0].mxu0
      %v1163 = vadd.f32 %v946, %v1162
      %v1164 = vpop.f32.mrb[0].mxu0
      %1165 = vmatprep.mubr.bf16.mxu0 0
      %1166 = vmatmul.mubr.bf16.gmra.mrb[0].mxu0 %v1058
      %v1167 = vpop.f32.mrb[0].mxu0
      %v1168 = vadd.f32 %v951, %v1167
      %v1169 = vpop.f32.mrb[0].mxu0
      %v1170 = vpop.f32.mrb[0].mxu0
      %v1171 = vadd.f32 %v954, %v1170
      %v1172 = vpop.f32.mrb[0].mxu0
      %1173 = vmatprep.mubr.bf16.mxu0 0
      %1174 = vmatmul.mubr.bf16.gmra.mrb[0].mxu0 %v1061
      %v1175 = vpop.f32.mrb[0].mxu0
      %v1176 = vadd.f32 %v959, %v1175
      %v1177 = vpop.f32.mrb[0].mxu0
      %v1178 = vpop.f32.mrb[0].mxu0
      %v1179 = vadd.f32 %v962, %v1178
      %v1180 = vpop.f32.mrb[0].mxu0
      %1181 = vmatprep.mubr.bf16.mxu0 0
      %1182 = vmatmul.mubr.bf16.gmra.mrb[0].mxu0 %v1064
      %v1183 = vpop.f32.mrb[0].mxu0
      %v1184 = vadd.f32 %v967, %v1183
      %v1185 = vpop.f32.mrb[0].mxu0
      %v1186 = vpop.f32.mrb[0].mxu0
      %v1187 = vadd.f32 %v970, %v1186
      %v1188 = vpop.f32.mrb[0].mxu0
      %1189 = vmatprep.mubr.bf16.mxu0 0
      %1190 = vmatmul.mubr.bf16.gmra.mrb[0].mxu0 %v1067
      %v1191 = vpop.f32.mrb[0].mxu0
      %v1192 = vadd.f32 %v975, %v1191
      %v1193 = vpop.f32.mrb[0].mxu0
      %v1194 = vpop.f32.mrb[0].mxu0
      %v1195 = vadd.f32 %v978, %v1194
      %v1196 = vpop.f32.mrb[0].mxu0
      %1197 = vmatprep.mubr.bf16.mxu0 0
      %1198 = vmatmul.mubr.bf16.gmra.mrb[0].mxu0 %v1070
      %v1199 = vpop.f32.mrb[0].mxu0
      %v1200 = vadd.f32 %v983, %v1199
      %v1201 = vpop.f32.mrb[0].mxu0
      %v1202 = vpop.f32.mrb[0].mxu0
      %v1203 = vadd.f32 %v986, %v1202
      %v1204 = vpop.f32.mrb[0].mxu0
      %1205 = vmatprep.mubr.bf16.mxu0 0
      %1206 = vmatmul.mubr.bf16.gmra.mrb[0].mxu0 %v1073
      %v1207 = vpop.f32.mrb[0].mxu0
      %v1208 = vadd.f32 %v991, %v1207
      %v1209 = vpop.f32.mrb[0].mxu0
      %v1210 = vpop.f32.mrb[0].mxu0
      %v1211 = vadd.f32 %v994, %v1210
      %v1212 = vpop.f32.mrb[0].mxu0
      %1213 = vmatprep.mubr.bf16.mxu0 0
      %1214 = vmatmul.mubr.bf16.gmra.mrb[0].mxu0 %v1076
      %v1215 = vpop.f32.mrb[0].mxu0
      %v1216 = vadd.f32 %v999, %v1215
      %v1217 = vpop.f32.mrb[0].mxu0
      %v1218 = vpop.f32.mrb[0].mxu0
      %v1219 = vadd.f32 %v1002, %v1218
      %v1220 = vpop.f32.mrb[0].mxu0
      %1221 = vmatprep.mubr.bf16.mxu0 0
      %1222 = vmatmul.mubr.bf16.gmra.mrb[0].mxu0 %v1079
      %v1223 = vpop.f32.mrb[0].mxu0
      %v1224 = vadd.f32 %v1007, %v1223
      %v1225 = vpop.f32.mrb[0].mxu0
      %v1226 = vpop.f32.mrb[0].mxu0
      %v1227 = vadd.f32 %v1010, %v1226
      %v1228 = vpop.f32.mrb[0].mxu0
      %1229 = vmatprep.mubr.bf16.mxu0 0
      %1230 = vmatmul.mubr.bf16.gmra.mrb[0].mxu0 %v1082
      %v1231 = vpop.f32.mrb[0].mxu0
      %v1232 = vadd.f32 %v1015, %v1231
      %v1233 = vpop.f32.mrb[0].mxu0
      %v1234 = vpop.f32.mrb[0].mxu0
      %v1235 = vadd.f32 %v1018, %v1234
      %v1236 = vpop.f32.mrb[0].mxu0
      %1237 = vmatprep.mubr.bf16.mxu0 0
      %1238 = vmatmul.mubr.bf16.gmra.mrb[0].mxu0 %v1085
      %v1239 = vpop.f32.mrb[0].mxu0
      %v1240 = vadd.f32 %v1023, %v1239
      %v1241 = vpop.f32.mrb[0].mxu0
      %v1242 = vpop.f32.mrb[0].mxu0
      %v1243 = vadd.f32 %v1026, %v1242
      %v1244 = vpop.f32.mrb[0].mxu0
      %1245 = vmatprep.mubr.bf16.mxu0 0
      %1246 = vmatmul.mubr.bf16.gmra.mrb[0].mxu0 %v1088
      %v1247 = vpop.f32.mrb[0].mxu0
      %v1248 = vadd.f32 %v1031, %v1247
      %v1249 = vpop.f32.mrb[0].mxu0
      %v1250 = vpop.f32.mrb[0].mxu0
      %v1251 = vadd.f32 %v1034, %v1250
      %v1252 = vpop.f32.mrb[0].mxu0
      %1253 = vdwg.mxu0
      %s1254 = scalar_lea.vmem [#allocation2], 32
      %v1255 = vld [vmem:[%s1254] sm:$0xff]
      %v1256 = vld [vmem:[%s1254 + $0x8] sm:$0xff]
      %v1257 = vld [vmem:[%s1254 + $0x10] sm:$0xff]
      %v1258 = vld [vmem:[%s1254 + $0x18] sm:$0xff]
      %v1259 = vld [vmem:[%s1254 + $0x20] sm:$0xff]
      %v1260 = vld [vmem:[%s1254 + $0x28] sm:$0xff]
      %v1261 = vld [vmem:[%s1254 + $0x30] sm:$0xff]
      %v1262 = vld [vmem:[%s1254 + $0x38] sm:$0xff]
      %v1263 = vld [vmem:[%s1254 + $0x40] sm:$0xff]
      %v1264 = vld [vmem:[%s1254 + $0x48] sm:$0xff]
      %v1265 = vld [vmem:[%s1254 + $0x50] sm:$0xff]
      %v1266 = vld [vmem:[%s1254 + $0x58] sm:$0xff]
      %v1267 = vld [vmem:[%s1254 + $0x60] sm:$0xff]
      %v1268 = vld [vmem:[%s1254 + $0x68] sm:$0xff]
      %v1269 = vld [vmem:[%s1254 + $0x70] sm:$0xff]
      %v1270 = vld [vmem:[%s1254 + $0x78] sm:$0xff]
      %v1271 = vld [vmem:[%s1254 + $0x80] sm:$0xff]
      %v1272 = vld [vmem:[%s1254 + $0x88] sm:$0xff]
      %v1273 = vld [vmem:[%s1254 + $0x90] sm:$0xff]
      %v1274 = vld [vmem:[%s1254 + $0x98] sm:$0xff]
      %v1275 = vld [vmem:[%s1254 + $0xa0] sm:$0xff]
      %v1276 = vld [vmem:[%s1254 + $0xa8] sm:$0xff]
      %v1277 = vld [vmem:[%s1254 + $0xb0] sm:$0xff]
      %v1278 = vld [vmem:[%s1254 + $0xb8] sm:$0xff]
      %v1279 = vld [vmem:[%s1254 + $0xc0] sm:$0xff]
      %v1280 = vld [vmem:[%s1254 + $0xc8] sm:$0xff]
      %v1281 = vld [vmem:[%s1254 + $0xd0] sm:$0xff]
      %v1282 = vld [vmem:[%s1254 + $0xd8] sm:$0xff]
      %v1283 = vld [vmem:[%s1254 + $0xe0] sm:$0xff]
      %v1284 = vld [vmem:[%s1254 + $0xe8] sm:$0xff]
      %v1285 = vld [vmem:[%s1254 + $0xf0] sm:$0xff]
      %v1286 = vld [vmem:[%s1254 + $0xf8] sm:$0xff]
      %v1287 = vpack.c.bf16 %v1256, %v1255
      %v1288 = vpack.c.bf16 %v1258, %v1257
      %v1289 = vpack.c.bf16 %v1260, %v1259
      %v1290 = vpack.c.bf16 %v1262, %v1261
      %v1291 = vpack.c.bf16 %v1264, %v1263
      %v1292 = vpack.c.bf16 %v1266, %v1265
      %v1293 = vpack.c.bf16 %v1268, %v1267
      %v1294 = vpack.c.bf16 %v1270, %v1269
      %v1295 = vpack.c.bf16 %v1272, %v1271
      %v1296 = vpack.c.bf16 %v1274, %v1273
      %v1297 = vpack.c.bf16 %v1276, %v1275
      %v1298 = vpack.c.bf16 %v1278, %v1277
      %v1299 = vpack.c.bf16 %v1280, %v1279
      %v1300 = vpack.c.bf16 %v1282, %v1281
      %v1301 = vpack.c.bf16 %v1284, %v1283
      %v1302 = vpack.c.bf16 %v1286, %v1285
      %s1303 = scalar_lea.vmem %s265, 16
      %v1304 = vld [vmem:[%s1303] sm:$0xf]
      %v1305 = vld [vmem:[%s1303 + $0x4] sm:$0x3]
      %v1308 = vunpack.c.l.b16 %v1304
      %v1309 = vunpack.c.l.b16 %v1305
      %v1310 = vpack.c.b16 %v1309, %v1308
      %v1312 = vsel %vm823, %v1287, 0
      %v1315 = vsel %vm823, %v1288, 0
      %v1318 = vsel %vm823, %v1289, 0
      %v1321 = vsel %vm823, %v1290, 0
      %v1324 = vsel %vm823, %v1291, 0
      %v1327 = vsel %vm823, %v1292, 0
      %v1330 = vsel %vm823, %v1293, 0
      %v1333 = vsel %vm823, %v1294, 0
      %v1336 = vsel %vm823, %v1295, 0
      %v1339 = vsel %vm823, %v1296, 0
      %v1342 = vsel %vm823, %v1297, 0
      %v1345 = vsel %vm823, %v1298, 0
      %v1348 = vsel %vm823, %v1299, 0
      %v1351 = vsel %vm823, %v1300, 0
      %v1354 = vsel %vm823, %v1301, 0
      %v1357 = vsel %vm823, %v1302, 0
      %v1360 = vsel %vm872, %v1310, 0
      %1362 = vmatprep.subr.bf16.mxu0 0
      %1363 = vmatpush1.bf16.msra.mxu0 %v1360
      %1364 = vmatprep.subr.bf16.mxu0 0
      %1365 = vmatpush1.bf16.msra.mxu0 0
      %1366 = vmatprep.subr.bf16.mxu0 0
      %1367 = vmatpush1.bf16.msra.mxu0 0
      %1368 = vmatprep.subr.bf16.mxu0 0
      %1369 = vmatpush1.bf16.msra.mxu0 0
      %1370 = vmatprep.subr.bf16.mxu0 0
      %1371 = vmatpush1.bf16.msra.mxu0 0
      %1372 = vmatprep.subr.bf16.mxu0 0
      %1373 = vmatpush1.bf16.msra.mxu0 0
      %1374 = vmatprep.subr.bf16.mxu0 0
      %1375 = vmatpush1.bf16.msra.mxu0 0
      %1376 = vmatprep.subr.bf16.mxu0 0
      %1377 = vmatpush1.bf16.msra.mxu0 0
      %1378 = vmatprep.subr.bf16.mxu0 0
      %1379 = vmatpush1.bf16.msra.mxu0 0
      %1380 = vmatprep.subr.bf16.mxu0 0
      %1381 = vmatpush1.bf16.msra.mxu0 0
      %1382 = vmatprep.subr.bf16.mxu0 0
      %1383 = vmatpush1.bf16.msra.mxu0 0
      %1384 = vmatprep.subr.bf16.mxu0 0
      %1385 = vmatpush1.bf16.msra.mxu0 0
      %1386 = vmatprep.subr.bf16.mxu0 0
      %1387 = vmatpush1.bf16.msra.mxu0 0
      %1388 = vmatprep.subr.bf16.mxu0 0
      %1389 = vmatpush1.bf16.msra.mxu0 0
      %1390 = vmatprep.subr.bf16.mxu0 0
      %1391 = vmatpush1.bf16.msra.mxu0 0
      %1392 = vmatprep.subr.bf16.mxu0 0
      %1393 = vmatpush1.bf16.msra.mxu0 0
      %1394 = vmatprep.mubr.bf16.mxu0 0
      %1395 = vmatmul.mubr.bf16.gmra.mrb[0].mxu0 %v1312
      %v1396 = vpop.f32.mrb[0].mxu0
      %v1397 = vadd.f32 0.0, %v1396
      %v1398 = vpop.f32.mrb[0].mxu0
      %v1399 = vpop.f32.mrb[0].mxu0
      %v1400 = vadd.f32 0.0, %v1399
      %v1401 = vpop.f32.mrb[0].mxu0
      %1402 = vmatprep.mubr.bf16.mxu0 0
      %1403 = vmatmul.mubr.bf16.gmra.mrb[0].mxu0 %v1315
      %v1404 = vpop.f32.mrb[0].mxu0
      %v1405 = vadd.f32 0.0, %v1404
      %v1406 = vpop.f32.mrb[0].mxu0
      %v1407 = vpop.f32.mrb[0].mxu0
      %v1408 = vadd.f32 0.0, %v1407
      %v1409 = vpop.f32.mrb[0].mxu0
      %1410 = vmatprep.mubr.bf16.mxu0 0
      %1411 = vmatmul.mubr.bf16.gmra.mrb[0].mxu0 %v1318
      %v1412 = vpop.f32.mrb[0].mxu0
      %v1413 = vadd.f32 0.0, %v1412
      %v1414 = vpop.f32.mrb[0].mxu0
      %v1415 = vpop.f32.mrb[0].mxu0
      %v1416 = vadd.f32 0.0, %v1415
      %v1417 = vpop.f32.mrb[0].mxu0
      %1418 = vmatprep.mubr.bf16.mxu0 0
      %1419 = vmatmul.mubr.bf16.gmra.mrb[0].mxu0 %v1321
      %v1420 = vpop.f32.mrb[0].mxu0
      %v1421 = vadd.f32 0.0, %v1420
      %v1422 = vpop.f32.mrb[0].mxu0
      %v1423 = vpop.f32.mrb[0].mxu0
      %v1424 = vadd.f32 0.0, %v1423
      %v1425 = vpop.f32.mrb[0].mxu0
      %1426 = vmatprep.mubr.bf16.mxu0 0
      %1427 = vmatmul.mubr.bf16.gmra.mrb[0].mxu0 %v1324
      %v1428 = vpop.f32.mrb[0].mxu0
      %v1429 = vadd.f32 0.0, %v1428
      %v1430 = vpop.f32.mrb[0].mxu0
      %v1431 = vpop.f32.mrb[0].mxu0
      %v1432 = vadd.f32 0.0, %v1431
      %v1433 = vpop.f32.mrb[0].mxu0
      %1434 = vmatprep.mubr.bf16.mxu0 0
      %1435 = vmatmul.mubr.bf16.gmra.mrb[0].mxu0 %v1327
      %v1436 = vpop.f32.mrb[0].mxu0
      %v1437 = vadd.f32 0.0, %v1436
      %v1438 = vpop.f32.mrb[0].mxu0
      %v1439 = vpop.f32.mrb[0].mxu0
      %v1440 = vadd.f32 0.0, %v1439
      %v1441 = vpop.f32.mrb[0].mxu0
      %1442 = vmatprep.mubr.bf16.mxu0 0
      %1443 = vmatmul.mubr.bf16.gmra.mrb[0].mxu0 %v1330
      %v1444 = vpop.f32.mrb[0].mxu0
      %v1445 = vadd.f32 0.0, %v1444
      %v1446 = vpop.f32.mrb[0].mxu0
      %v1447 = vpop.f32.mrb[0].mxu0
      %v1448 = vadd.f32 0.0, %v1447
      %v1449 = vpop.f32.mrb[0].mxu0
      %1450 = vmatprep.mubr.bf16.mxu0 0
      %1451 = vmatmul.mubr.bf16.gmra.mrb[0].mxu0 %v1333
      %v1452 = vpop.f32.mrb[0].mxu0
      %v1453 = vadd.f32 0.0, %v1452
      %v1454 = vpop.f32.mrb[0].mxu0
      %v1455 = vpop.f32.mrb[0].mxu0
      %v1456 = vadd.f32 0.0, %v1455
      %v1457 = vpop.f32.mrb[0].mxu0
      %1458 = vmatprep.mubr.bf16.mxu0 0
      %1459 = vmatmul.mubr.bf16.gmra.mrb[0].mxu0 %v1336
      %v1460 = vpop.f32.mrb[0].mxu0
      %v1461 = vadd.f32 0.0, %v1460
      %v1462 = vpop.f32.mrb[0].mxu0
      %v1463 = vpop.f32.mrb[0].mxu0
      %v1464 = vadd.f32 0.0, %v1463
      %v1465 = vpop.f32.mrb[0].mxu0
      %1466 = vmatprep.mubr.bf16.mxu0 0
      %1467 = vmatmul.mubr.bf16.gmra.mrb[0].mxu0 %v1339
      %v1468 = vpop.f32.mrb[0].mxu0
      %v1469 = vadd.f32 0.0, %v1468
      %v1470 = vpop.f32.mrb[0].mxu0
      %v1471 = vpop.f32.mrb[0].mxu0
      %v1472 = vadd.f32 0.0, %v1471
      %v1473 = vpop.f32.mrb[0].mxu0
      %1474 = vmatprep.mubr.bf16.mxu0 0
      %1475 = vmatmul.mubr.bf16.gmra.mrb[0].mxu0 %v1342
      %v1476 = vpop.f32.mrb[0].mxu0
      %v1477 = vadd.f32 0.0, %v1476
      %v1478 = vpop.f32.mrb[0].mxu0
      %v1479 = vpop.f32.mrb[0].mxu0
      %v1480 = vadd.f32 0.0, %v1479
      %v1481 = vpop.f32.mrb[0].mxu0
      %1482 = vmatprep.mubr.bf16.mxu0 0
      %1483 = vmatmul.mubr.bf16.gmra.mrb[0].mxu0 %v1345
      %v1484 = vpop.f32.mrb[0].mxu0
      %v1485 = vadd.f32 0.0, %v1484
      %v1486 = vpop.f32.mrb[0].mxu0
      %v1487 = vpop.f32.mrb[0].mxu0
      %v1488 = vadd.f32 0.0, %v1487
      %v1489 = vpop.f32.mrb[0].mxu0
      %1490 = vmatprep.mubr.bf16.mxu0 0
      %1491 = vmatmul.mubr.bf16.gmra.mrb[0].mxu0 %v1348
      %v1492 = vpop.f32.mrb[0].mxu0
      %v1493 = vadd.f32 0.0, %v1492
      %v1494 = vpop.f32.mrb[0].mxu0
      %v1495 = vpop.f32.mrb[0].mxu0
      %v1496 = vadd.f32 0.0, %v1495
      %v1497 = vpop.f32.mrb[0].mxu0
      %1498 = vmatprep.mubr.bf16.mxu0 0
      %1499 = vmatmul.mubr.bf16.gmra.mrb[0].mxu0 %v1351
      %v1500 = vpop.f32.mrb[0].mxu0
      %v1501 = vadd.f32 0.0, %v1500
      %v1502 = vpop.f32.mrb[0].mxu0
      %v1503 = vpop.f32.mrb[0].mxu0
      %v1504 = vadd.f32 0.0, %v1503
      %v1505 = vpop.f32.mrb[0].mxu0
      %1506 = vmatprep.mubr.bf16.mxu0 0
      %1507 = vmatmul.mubr.bf16.gmra.mrb[0].mxu0 %v1354
      %v1508 = vpop.f32.mrb[0].mxu0
      %v1509 = vadd.f32 0.0, %v1508
      %v1510 = vpop.f32.mrb[0].mxu0
      %v1511 = vpop.f32.mrb[0].mxu0
      %v1512 = vadd.f32 0.0, %v1511
      %v1513 = vpop.f32.mrb[0].mxu0
      %1514 = vmatprep.mubr.bf16.mxu0 0
      %1515 = vmatmul.mubr.bf16.gmra.mrb[0].mxu0 %v1357
      %v1516 = vpop.f32.mrb[0].mxu0
      %v1517 = vadd.f32 0.0, %v1516
      %v1518 = vpop.f32.mrb[0].mxu0
      %v1519 = vpop.f32.mrb[0].mxu0
      %v1520 = vadd.f32 0.0, %v1519
      %v1521 = vpop.f32.mrb[0].mxu0
      %1522 = vdwg.mxu0
      %v1523 = vadd.f32 %v1128, %v1397
      %v1524 = vadd.f32 %v1131, %v1400
      %v1525 = vadd.f32 %v1136, %v1405
      %v1526 = vadd.f32 %v1139, %v1408
      %v1527 = vadd.f32 %v1144, %v1413
      %v1528 = vadd.f32 %v1147, %v1416
      %v1529 = vadd.f32 %v1152, %v1421
      %v1530 = vadd.f32 %v1155, %v1424
      %v1531 = vadd.f32 %v1160, %v1429
      %v1532 = vadd.f32 %v1163, %v1432
      %v1533 = vadd.f32 %v1168, %v1437
      %v1534 = vadd.f32 %v1171, %v1440
      %v1535 = vadd.f32 %v1176, %v1445
      %v1536 = vadd.f32 %v1179, %v1448
      %v1537 = vadd.f32 %v1184, %v1453
      %v1538 = vadd.f32 %v1187, %v1456
      %v1539 = vadd.f32 %v1192, %v1461
      %v1540 = vadd.f32 %v1195, %v1464
      %v1541 = vadd.f32 %v1200, %v1469
      %v1542 = vadd.f32 %v1203, %v1472
      %v1543 = vadd.f32 %v1208, %v1477
      %v1544 = vadd.f32 %v1211, %v1480
      %v1545 = vadd.f32 %v1216, %v1485
      %v1546 = vadd.f32 %v1219, %v1488
      %v1547 = vadd.f32 %v1224, %v1493
      %v1548 = vadd.f32 %v1227, %v1496
      %v1549 = vadd.f32 %v1232, %v1501
      %v1550 = vadd.f32 %v1235, %v1504
      %v1551 = vadd.f32 %v1240, %v1509
      %v1552 = vadd.f32 %v1243, %v1512
      %v1553 = vadd.f32 %v1248, %v1517
      %v1554 = vadd.f32 %v1251, %v1520
      %v1555 = vld [vmem:[%s256] sm:$0x1]
      %v1557 = vlaneseq
      %v1558 = vshrl.u32 %v1557, 7
      %v1559 = vsub.s32 0, %v1558
      %v1560 = vrot.slane %v1555, %v1559
      %v1562 = vmul.f32 %v1523, %v1560
      %v1563 = vmul.f32 %v1524, %v1560
      %v1564 = vmul.f32 %v1525, %v1560
      %v1565 = vmul.f32 %v1526, %v1560
      %v1566 = vmul.f32 %v1527, %v1560
      %v1567 = vmul.f32 %v1528, %v1560
      %v1568 = vmul.f32 %v1529, %v1560
      %v1569 = vmul.f32 %v1530, %v1560
      %v1570 = vmul.f32 %v1531, %v1560
      %v1571 = vmul.f32 %v1532, %v1560
      %v1572 = vmul.f32 %v1533, %v1560
      %v1573 = vmul.f32 %v1534, %v1560
      %v1574 = vmul.f32 %v1535, %v1560
      %v1575 = vmul.f32 %v1536, %v1560
      %v1576 = vmul.f32 %v1537, %v1560
      %v1577 = vmul.f32 %v1538, %v1560
      %v1578 = vmul.f32 %v1539, %v1560
      %v1579 = vmul.f32 %v1540, %v1560
      %v1580 = vmul.f32 %v1541, %v1560
      %v1581 = vmul.f32 %v1542, %v1560
      %v1582 = vmul.f32 %v1543, %v1560
      %v1583 = vmul.f32 %v1544, %v1560
      %v1584 = vmul.f32 %v1545, %v1560
      %v1585 = vmul.f32 %v1546, %v1560
      %v1586 = vmul.f32 %v1547, %v1560
      %v1587 = vmul.f32 %v1548, %v1560
      %v1588 = vmul.f32 %v1549, %v1560
      %v1589 = vmul.f32 %v1550, %v1560
      %v1590 = vmul.f32 %v1551, %v1560
      %v1591 = vmul.f32 %v1552, %v1560
      %v1592 = vmul.f32 %v1553, %v1560
      %v1593 = vmul.f32 %v1554, %v1560
      %vm1594 = vcmask 64512
      %1595 = vst.msk [vmem:[%s273] sm:$0xff] %vm1594, %v1562
      %1596 = vst.msk [vmem:[%s273 + $0x8] sm:$0xff] %vm1594, %v1563
      %1597 = vst.msk [vmem:[%s273 + $0x10] sm:$0xff] %vm1594, %v1564
      %1598 = vst.msk [vmem:[%s273 + $0x18] sm:$0xff] %vm1594, %v1565
      %1599 = vst.msk [vmem:[%s273 + $0x20] sm:$0xff] %vm1594, %v1566
      %1600 = vst.msk [vmem:[%s273 + $0x28] sm:$0xff] %vm1594, %v1567
      %1601 = vst.msk [vmem:[%s273 + $0x30] sm:$0xff] %vm1594, %v1568
      %1602 = vst.msk [vmem:[%s273 + $0x38] sm:$0xff] %vm1594, %v1569
      %1603 = vst.msk [vmem:[%s273 + $0x40] sm:$0xff] %vm1594, %v1570
      %1604 = vst.msk [vmem:[%s273 + $0x48] sm:$0xff] %vm1594, %v1571
      %1605 = vst.msk [vmem:[%s273 + $0x50] sm:$0xff] %vm1594, %v1572
      %1606 = vst.msk [vmem:[%s273 + $0x58] sm:$0xff] %vm1594, %v1573
      %1607 = vst.msk [vmem:[%s273 + $0x60] sm:$0xff] %vm1594, %v1574
      %1608 = vst.msk [vmem:[%s273 + $0x68] sm:$0xff] %vm1594, %v1575
      %1609 = vst.msk [vmem:[%s273 + $0x70] sm:$0xff] %vm1594, %v1576
      %1610 = vst.msk [vmem:[%s273 + $0x78] sm:$0xff] %vm1594, %v1577
      %1611 = vst.msk [vmem:[%s273 + $0x80] sm:$0xff] %vm1594, %v1578
      %1612 = vst.msk [vmem:[%s273 + $0x88] sm:$0xff] %vm1594, %v1579
      %1613 = vst.msk [vmem:[%s273 + $0x90] sm:$0xff] %vm1594, %v1580
      %1614 = vst.msk [vmem:[%s273 + $0x98] sm:$0xff] %vm1594, %v1581
      %1615 = vst.msk [vmem:[%s273 + $0xa0] sm:$0xff] %vm1594, %v1582
      %1616 = vst.msk [vmem:[%s273 + $0xa8] sm:$0xff] %vm1594, %v1583
      %1617 = vst.msk [vmem:[%s273 + $0xb0] sm:$0xff] %vm1594, %v1584
      %1618 = vst.msk [vmem:[%s273 + $0xb8] sm:$0xff] %vm1594, %v1585
      %1619 = vst.msk [vmem:[%s273 + $0xc0] sm:$0xff] %vm1594, %v1586
      %1620 = vst.msk [vmem:[%s273 + $0xc8] sm:$0xff] %vm1594, %v1587
      %1621 = vst.msk [vmem:[%s273 + $0xd0] sm:$0xff] %vm1594, %v1588
      %1622 = vst.msk [vmem:[%s273 + $0xd8] sm:$0xff] %vm1594, %v1589
      %1623 = vst.msk [vmem:[%s273 + $0xe0] sm:$0xff] %vm1594, %v1590
      %1624 = vst.msk [vmem:[%s273 + $0xe8] sm:$0xff] %vm1594, %v1591
      %1625 = vst.msk [vmem:[%s273 + $0xf0] sm:$0xff] %vm1594, %v1592
      %1626 = vst.msk [vmem:[%s273 + $0xf8] sm:$0xff] %vm1594, %v1593
      %p1627 = scmp.lt.s32.totalorder %s19, 1
      %s1628 = scalar_select %p1627, %s19, 1
      %p1629 = scmp.lt.s32.totalorder %s20, 0
      %s1630 = scalar_select %p1629, %s20, 0
      %s1631 = smul.addr %s1628, 32
      %s1632 = sadd.s32 %s1630, %s1631
      %s1633 = smul.addr %s1632, 8
      %s1634 = scalar_lea.vmem %s4, %s1633
      // Predicated region
      $region41: #{tpu_custom_call.1} parent=35 // pred_check
        %p1635 = pneg %p153
      $region42: #{tpu_custom_call.1} parent=35 // pred_check_branch
        %1637 = sbr.rel (%p1635) target = $region44
      $region43: #{tpu_custom_call.1} parent=35 // pred_region
        _
      $region44: #{tpu_custom_call.1} parent=35 // pred_fallthru
        _
    $region36: #{tpu_custom_call.1} parent=5 // pred_fallthru
      _
    %p1638 = scmp.le.s32.totalorder 2, %s10
    // Predicated region
    $region45: #{tpu_custom_call.1} parent=5 // pred_check
      %p1639 = pneg %p1638
    $region46: #{tpu_custom_call.1} parent=5 // pred_check_branch
      %1641 = sbr.rel (%p1639) target = $region48
    $region47: #{tpu_custom_call.1} parent=5 // pred_region
      %s1642 = ssub.s32 %s10, 2
      // Predicated region
      $region49: #{tpu_custom_call.1} parent=47 // pred_check
        %p1643 = pneg %p159
      $region50: #{tpu_custom_call.1} parent=47 // pred_check_branch
        %1645 = sbr.rel (%p1643) target = $region52
      $region51: #{tpu_custom_call.1} parent=47 // pred_region
        %p1646 = scmp.lt.s32.totalorder %s21, 1
        %s1647 = scalar_select %p1646, %s21, 1
        %p1648 = scmp.lt.s32.totalorder %s22, 0
        %s1649 = scalar_select %p1648, %s22, 0
        %s1650 = smul.addr %s1647, 32
        %s1651 = sadd.s32 %s1649, %s1650
        %s1652 = smul.addr %s1651, 8
        %s1653 = scalar_lea.vmem %s4, %s1652
      $region52: #{tpu_custom_call.1} parent=47 // pred_fallthru
        _
    $region48: #{tpu_custom_call.1} parent=5 // pred_fallthru
      _
  $region6: #{tpu_custom_call.1} parent=0 // loop_footer
    %s14 = sadd.s32 1, %s10
  $region7: #{tpu_custom_call.1} parent=0 // loop_footer_branch
    %9 = sbr.rel target = $region3
  $region8: #{tpu_custom_call.1} parent=0 // loop_exit
    _

</llo_original>
